<compile_context>
chip_gen: v7x
topology: tpu7x:2x2x1
jax: 0.10.0
libtpu: 0.0.40
codegen_flags: <defaults>
</compile_context>

<pallas_src>
import jax
import jax.numpy as jnp
from jax.experimental import pallas as pl
from jax.experimental.pallas import tpu as pltpu

_LANE = 128
_TARGET_TILE_ROWS = 4096                       # up to 2 MiB f32 per input block
_VMEM_TILE_BUDGET_BYTES = 28 * 1024 * 1024     # double-buffered tiles, all gens
_MIN_VMEM_LIMIT = 32 * 1024 * 1024
_MAX_VMEM_LIMIT = 48 * 1024 * 1024             # well under v7x 64 MiB physical
_MIN_PALLAS_ELEMS = 1 << 18                    # below this plain XLA wins
_MIN_SPLIT_ROWS = 1024                         # keep >=2 grid steps once data
                                               # is this big (v7x: 2 TCs)


def _sublane_multiple(dtype):
    # Packed sublane multiple: 8 for 32-bit, 16 for bf16/fp16, 32 for int8/fp8.
    return max(8, 32 // jnp.dtype(dtype).itemsize)


def _make_scaled_sum_kernel(num_inputs, scale):
    scale = float(scale)  # Python scalar -> inlined literal (no captured const)

    def kernel(*refs):
        x_refs = refs[:num_inputs]
        o_ref = refs[num_inputs]
        # Sum all paths with f32 accumulation; scale once at the end.
        acc = x_refs[0][...].astype(jnp.float32)
        for r in x_refs[1:]:            # width is small & static -> unrolled
            acc = acc + r[...].astype(jnp.float32)
        o_ref[...] = acc * scale

    return kernel


def _scaled_sum_jnp(paths, scale):
    acc = paths[0].astype(jnp.float32)
    for p in paths[1:]:
        acc = acc + p.astype(jnp.float32)
    return acc * jnp.float32(scale)


def _scaled_sum_pallas(paths, scale):
    """Pallas path: every paths[i] is 1-D with length divisible by 128."""
    num = len(paths)
    n = paths[0].shape[0]
    rows = n // _LANE

    # Packed-layout row alignment (output is f32 -> at least 8).
    row_align = max(_sublane_multiple(p.dtype) for p in paths)
    # Dtype-aware double-buffered VMEM per row of 128 lanes:
    #   2 buffers per input (native dtype) + 2 buffers for the f32 output.
    bytes_per_row = (sum(2 * jnp.dtype(p.dtype).itemsize for p in paths)
                     + 2 * 4) * _LANE

    tr_cap = max(row_align,
                 (_VMEM_TILE_BUDGET_BYTES // bytes_per_row)
                 // row_align * row_align)
    tr = min(_TARGET_TILE_ROWS, tr_cap)
    if rows >= 2 * _MIN_SPLIT_ROWS:
        # Keep at least 2 grid steps so both v7x TensorCores get work
        # (no-op cost on single-TC v5e/v6e).
        half = pl.cdiv(pl.cdiv(rows, 2), row_align) * row_align
        tr = min(tr, half)
    rows_al = pl.cdiv(rows, row_align) * row_align
    tr = max(row_align, min(tr, rows_al))
    grid = (pl.cdiv(rows, tr),)

    vmem_limit = int(min(max(bytes_per_row * tr + (8 << 20), _MIN_VMEM_LIMIT),
                         _MAX_VMEM_LIMIT))

    x2 = [p.reshape(rows, _LANE) for p in paths]   # free contiguous reshape
    kernel = _make_scaled_sum_kernel(num, scale)

    out = pl.pallas_call(
        kernel,
        out_shape=jax.ShapeDtypeStruct((rows, _LANE), jnp.float32),
        grid_spec=pltpu.PrefetchScalarGridSpec(
            num_scalar_prefetch=0,
            grid=grid,
            in_specs=[pl.BlockSpec((tr, _LANE), lambda r: (r, 0))
                      for _ in range(num)],
            out_specs=pl.BlockSpec((tr, _LANE), lambda r: (r, 0)),
        ),
        compiler_params=pltpu.CompilerParams(
            dimension_semantics=("parallel",),
            vmem_limit_bytes=vmem_limit),
    )(*x2)
    return out.reshape(n)


def scaled_sum_join(paths, scale):
    """out = (sum_i paths[i]) * scale, elementwise, float32 result.

    paths: list of 1-D arrays of identical length N (any float dtype).
    """
    n = paths[0].shape[0]
    if n < _MIN_PALLAS_ELEMS:
        # pallas_call launch + pipeline prologue dominates at small sizes;
        # XLA's fused elementwise already saturates HBM here.
        return _scaled_sum_jnp(paths, scale)
    tail = n % _LANE
    if tail == 0:
        # Common case: no padding at all; ragged last row-block is handled by
        # the grid (OOB reads never reach valid output, OOB writes dropped).
        return _scaled_sum_pallas(paths, scale)
    # Rare misaligned case: lane-aligned prefix through Pallas, <=127-element
    # tail in plain XLA (avoids a full-array pad + output slice).
    n_main = n - tail
    main = _scaled_sum_pallas([p[:n_main] for p in paths], scale)
    rest = _scaled_sum_jnp([p[n_main:] for p in paths], scale)
    return jnp.concatenate([main, rest])


class LastJoinerPallas:
    """JAX/Pallas port of LastJoiner (deterministic init from a PRNG key)."""

    def __init__(self, c, key, drop_p=0.15, global_p=0.5, deepest=False):
        self.width = c
        self.drop_p = drop_p
        self.force_path = deepest
        k_switch, k_path = jax.random.split(key)
        if deepest:
            self.is_global = True
            self.global_path = jnp.array([1.0] + [0.0] * (c - 1), jnp.float32)
        else:
            # deterministic stand-ins for torch.distributions.Binomial /
            # rand_one_in_array (random one-hot over the width paths)
            self.is_global = bool(jax.random.bernoulli(k_switch, global_p))
            base = jnp.array([1.0] + [0.0] * (c - 1), jnp.float32)
            perm = jax.random.permutation(k_path, c)
            self.global_path = base[perm]
        # Index of the single active path (one-hot); concrete at init time so
        # the global branch can skip reading the other width-1 paths entirely.
        self.path_idx = int(jnp.argmax(self.global_path))
        # TODO(synk): training-mode local drop-path (_gen_local_drops, Bernoulli
        # per-path drops) is only reached when inputs.requires_grad; not
        # implemented for this inference-only forward.

    def __call__(self, xs):
        width = len(xs)
        xs = [jnp.asarray(x) for x in xs]  # keep native dtype (bf16 stays bf16)
        out_shape = xs[0].shape
        flats = [x.reshape(-1) for x in xs]
        if self.force_path or self.is_global:
            # _drop_path (global): mean over width of (x * one-hot path).
            # Only one path contributes -> single-input scale kernel.
            if self.path_idx < width:
                out = scaled_sum_join([flats[self.path_idx]], 1.0 / width)
            else:
                # one-hot entry lies outside the truncated width -> zeros
                out = jnp.zeros((flats[0].shape[0],), jnp.float32)
        else:
            # _ave: plain mean over the stacked paths.
            out = scaled_sum_join(flats, 1.0 / width)
        return out.reshape(out_shape).astype(jnp.float32)


if __name__ == "__main__":
    key = jax.random.PRNGKey(0)
    keys = jax.random.split(key, 8)
    k_init, k1, k2, k3, k4, k5, k6, k7 = keys

    c = 2  # number of fractal paths joined

    # 1) canonical small shape; PRNG-derived global switch/path (whichever
    #    branch it picks).  Small-N bypass path (plain fused XLA).
    B, C, H, W = 2, 4, 16, 16
    joiner = LastJoinerPallas(c, k_init)
    xs = [jax.random.normal(k1, (B, C, H, W), jnp.float32),
          jax.random.normal(k2, (B, C, H, W), jnp.float32)]
    out = jax.block_until_ready(joiner(xs))
    stack = jnp.stack(xs, axis=0)
    if joiner.force_path or joiner.is_global:
        ref = jnp.mean(stack * joiner.global_path[:c].reshape(c, 1, 1, 1, 1), 0)
    else:
        ref = jnp.mean(stack, axis=0)
    assert out.shape == (B, C, H, W) and out.dtype == jnp.float32
    assert jnp.allclose(out, ref, atol=1e-5, rtol=1e-5)

    # 2) plain-mean branch (multi-input Pallas sum kernel), bf16 inputs kept
    #    bf16 in HBM, large enough for the Pallas path and >=2 grid steps.
    joiner_mean = LastJoinerPallas(c, k_init)
    joiner_mean.is_global = False
    joiner_mean.force_path = False
    shp2 = (4, 16, 96, 96)   # 589,824 elements, lane aligned
    xs2 = [jax.random.normal(k3, shp2, jnp.float32).astype(jnp.bfloat16),
           jax.random.normal(k4, shp2, jnp.float32).astype(jnp.bfloat16)]
    out2 = jax.block_until_ready(joiner_mean(xs2))
    ref2 = jnp.mean(jnp.stack([x.astype(jnp.float32) for x in xs2], 0), 0)
    assert out2.shape == shp2 and out2.dtype == jnp.float32
    assert jnp.allclose(out2, ref2, atol=1e-3, rtol=1e-3)

    # 3) global/one-hot branch (deepest=True), small shape -> bypass path.
    joiner_deep = LastJoinerPallas(c, k_init, deepest=True)
    out3 = jax.block_until_ready(joiner_deep(xs))
    ref3 = xs[0] / c
    assert jnp.allclose(out3, ref3, atol=1e-5, rtol=1e-5)

    # 4) plain-mean branch, f32, N NOT a multiple of 128 and multiple (ragged)
    #    grid steps: exercises the aligned-prefix + tiny-tail handling.
    joiner_mean2 = LastJoinerPallas(c, k_init)
    joiner_mean2.is_global = False
    joiner_mean2.force_path = False
    shp4 = (4, 7, 101, 103)  # 291,284 elements, 291284 % 128 == 84
    xs4 = [jax.random.normal(k5, shp4, jnp.float32),
           jax.random.normal(k6, shp4, jnp.float32)]
    out4 = jax.block_until_ready(joiner_mean2(xs4))
    ref4 = jnp.mean(jnp.stack(xs4, 0), 0)
    assert out4.shape == shp4 and out4.dtype == jnp.float32
    assert jnp.allclose(out4, ref4, atol=1e-5, rtol=1e-5)

    # 5) global/one-hot branch at a large size: single-path scale kernel via
    #    Pallas (only the selected path is read from HBM).
    joiner_deep2 = LastJoinerPallas(c, k_init, deepest=True)
    xs5 = [jax.random.normal(k7, shp2, jnp.float32).astype(jnp.bfloat16),
           xs2[1]]
    out5 = jax.block_until_ready(joiner_deep2(xs5))
    ref5 = xs5[0].astype(jnp.float32) / c
    assert out5.shape == shp2 and out5.dtype == jnp.float32
    assert jnp.allclose(out5, ref5, atol=1e-3, rtol=1e-3)

    print("KERNEL_OK")
</pallas_src>

<mosaic_0001>
module attributes {stable_mosaic.version = 11 : i64} {
  func.func @kernel(%arg0: i32, %arg1: memref<2304x128xbf16, #tpu.memory_space<vmem>>, %arg2: memref<2304x128xbf16, #tpu.memory_space<vmem>>, %arg3: memref<2304x128xf32, #tpu.memory_space<vmem>>) attributes {dimension_semantics = [#tpu.dimension_semantics<parallel>], iteration_bounds = array<i64: 2>, scalar_prefetch = 0 : i64, scratch_operands = 0 : i64, tpu.core_type = #tpu.core_type<tc>, window_params = [{transform_indices = @transform_0, window_bounds = array<i64: 2304, 128>}, {transform_indices = @transform_1, window_bounds = array<i64: 2304, 128>}, {transform_indices = @transform_2, window_bounds = array<i64: 2304, 128>}]} {
    %c0 = arith.constant 0 : index
    %c0_0 = arith.constant 0 : index
    %0 = vector.load %arg1[%c0, %c0_0] : memref<2304x128xbf16, #tpu.memory_space<vmem>>, vector<2304x128xbf16>
    %1 = arith.extf %0 : vector<2304x128xbf16> to vector<2304x128xf32>
    %c0_1 = arith.constant 0 : index
    %c0_2 = arith.constant 0 : index
    %2 = vector.load %arg2[%c0_1, %c0_2] : memref<2304x128xbf16, #tpu.memory_space<vmem>>, vector<2304x128xbf16>
    %3 = arith.extf %2 : vector<2304x128xbf16> to vector<2304x128xf32>
    %4 = arith.addf %1, %3 : vector<2304x128xf32>
    %cst = arith.constant 5.000000e-01 : f32
    %5 = vector.broadcast %cst : f32 to vector<2304x128xf32>
    %6 = arith.mulf %4, %5 : vector<2304x128xf32>
    %c0_3 = arith.constant 0 : index
    %c0_4 = arith.constant 0 : index
    %7 = vector.load %arg3[%c0_3, %c0_4] : memref<2304x128xf32, #tpu.memory_space<vmem>>, vector<2304x128xf32>
    tpu.vector_store %arg3[%c0_3, %c0_4], %6 {strides = array<i32>} : memref<2304x128xf32, #tpu.memory_space<vmem>>, vector<2304x128xf32>,
    return
  }
  func.func @transform_0(%arg0: i32) -> (i32, i32) {
    %c0_i32 = arith.constant 0 : i32
    %c0_i32_0 = arith.constant 0 : i32
    return %arg0, %c0_i32 : i32, i32
  }
  func.func @transform_1(%arg0: i32) -> (i32, i32) {
    %c0_i32 = arith.constant 0 : i32
    %c0_i32_0 = arith.constant 0 : i32
    return %arg0, %c0_i32 : i32, i32
  }
  func.func @transform_2(%arg0: i32) -> (i32, i32) {
    %c0_i32 = arith.constant 0 : i32
    %c0_i32_0 = arith.constant 0 : i32
    return %arg0, %c0_i32 : i32, i32
  }
}

</mosaic_0001>

<llo_original>
// kernel: tpu_custom_call.1
$region0: #{tpu_custom_call.1}
  #allocation0 [shape = 'u32[]', space=smem, size = 0x4, offset = 0x4, fixed_abs, tag = 'smem constant byte address 0x4 - core index']
  #allocation1 [shape = 'u32[144,128]{1,0:T(1,128)}', space=vmem, size = 0x12000, scoped, tag = 'internal scratch']
  %s0 = inlined_call_operand.hbm [shape: bf16[4608,128], index: 0, kind: input, shape index: {}]
  %s1 = inlined_call_operand.hbm [shape: bf16[4608,128], index: 1, kind: input, shape index: {}]
  %s2 = inlined_call_operand.hbm [shape: f32[4608,128], index: 2, kind: output, shape index: {}]
  %s3 = sld [smem:[#allocation0]]
  $region49: #{tpu_custom_call.1} parent=0
    _
  %s5 = ssub.s32 1, %s3
  %s6 = scalar_select 0, %s5, %s3
  $region1: #{tpu_custom_call.1} parent=0
    #allocation2 [shape = 'u8[1179648]{0}', space=vmem, size = 0x120000, scoped, tag = 'input window, operand 0']
    #allocation3 [shape = 's32[2]{0}', space=sflag, size = 0x8, scoped, tag = 'scoped memory for tpu_custom_call.1']
    #allocation4 [shape = 's32[2]{0}', space=sflag, size = 0x8, scoped, tag = 'scoped memory for tpu_custom_call.1']
    #allocation5 [shape = 'u8[1179648]{0}', space=vmem, size = 0x120000, scoped, tag = 'input window, operand 1']
    #allocation6 [shape = 's32[2]{0}', space=sflag, size = 0x8, scoped, tag = 'scoped memory for tpu_custom_call.1']
    #allocation7 [shape = 'u8[2359296]{0}', space=vmem, size = 0x240000, scoped, tag = 'output window, operand 0']
    %7 = vsyncpa [#allocation3], 0
    %s8 = scalar_lea.sflag [#allocation3], 1
    %9 = vsyncpa %s8, 0
    %10 = vsyncpa [#allocation6], 0
    %s11 = scalar_lea.sflag [#allocation6], 1
    %12 = vsyncpa %s11, 0
    %13 = vsyncpa [#allocation4], 0
    %s14 = scalar_lea.sflag [#allocation4], 1
    %15 = vsyncpa %s14, 0
    loop: start=0, step=1, limit=4
    $region2: #{tpu_custom_call.1} parent=1 // loop_pre_header
      _
    $region3: #{tpu_custom_call.1} parent=1 // loop_header
      %s17 = sphi 0, %s21
      %p18 = scmp.ge.s32.totalorder %s17, 4
      %s27 = sphi 0, %s29
      %s30 = sphi 0, %s27
      %s31 = sphi 0, %s30
      %s47 = sphi 0, %s31
      %s53 = sphi 0, %s55
      %s56 = sphi 0, %s53
      %s57 = sphi 0, %s56
      %s73 = sphi 0, %s57
      %s79 = sphi 0, %s81
      %s82 = sphi 0, %s79
      %s83 = sphi 0, %s82
      %s99 = sphi 0, %s83
    $region4: #{tpu_custom_call.1} parent=1 // loop_header_branch
      %20 = sbr.rel (%p18) target = $region8
    $region5: #{tpu_custom_call.1} parent=1 // loop_body
      %s22 = ssub.s32 %s17, 1
      %s23 = ssub.s32 %s17, 2
      %s24 = sadd.s32 %s17, 1
      %s25 = ssub.s32 %s17, %s24
      %p26 = scmp.eq.s32.totalorder %s25, 0
      %s28 = sadd.s32 %s27, 1
      %s29 = scalar_select %p26, %s27, %s28
      %p32 = pneg %p26
      %p33 = scmp.eq.s32.totalorder %s17, 1
      %p34 = por %p32, %p33
      %p35 = scmp.ne.s32.totalorder %s27, %s30
      %p36 = scmp.eq.s32.totalorder %s17, 0
      %p37 = por %p35, %p36
      %p38 = scmp.ne.s32.totalorder %s27, %s30
      %p39 = scmp.eq.s32.totalorder %s22, 1
      %p40 = por %p38, %p39
      %p41 = scmp.ne.s32.totalorder %s30, %s31
      %p42 = scmp.eq.s32.totalorder %s22, 0
      %p43 = por %p41, %p42
      %p44 = scmp.ne.s32.totalorder %s30, %s31
      %p45 = scmp.eq.s32.totalorder %s23, 1
      %p46 = por %p44, %p45
      %p48 = scmp.ne.s32.totalorder %s31, %s47
      %p49 = scmp.eq.s32.totalorder %s23, 0
      %p50 = por %p48, %p49
      %s51 = ssub.s32 %s17, %s24
      %p52 = scmp.eq.s32.totalorder %s51, 0
      %s54 = sadd.s32 %s53, 1
      %s55 = scalar_select %p52, %s53, %s54
      %p58 = pneg %p52
      %p59 = scmp.eq.s32.totalorder %s17, 1
      %p60 = por %p58, %p59
      %p61 = scmp.ne.s32.totalorder %s53, %s56
      %p62 = scmp.eq.s32.totalorder %s17, 0
      %p63 = por %p61, %p62
      %p64 = scmp.ne.s32.totalorder %s53, %s56
      %p65 = scmp.eq.s32.totalorder %s22, 1
      %p66 = por %p64, %p65
      %p67 = scmp.ne.s32.totalorder %s56, %s57
      %p68 = scmp.eq.s32.totalorder %s22, 0
      %p69 = por %p67, %p68
      %p70 = scmp.ne.s32.totalorder %s56, %s57
      %p71 = scmp.eq.s32.totalorder %s23, 1
      %p72 = por %p70, %p71
      %p74 = scmp.ne.s32.totalorder %s57, %s73
      %p75 = scmp.eq.s32.totalorder %s23, 0
      %p76 = por %p74, %p75
      %s77 = ssub.s32 %s17, %s24
      %p78 = scmp.eq.s32.totalorder %s77, 0
      %s80 = sadd.s32 %s79, 1
      %s81 = scalar_select %p78, %s79, %s80
      %p84 = pneg %p78
      %p85 = scmp.eq.s32.totalorder %s17, 1
      %p86 = por %p84, %p85
      %p87 = scmp.ne.s32.totalorder %s79, %s82
      %p88 = scmp.eq.s32.totalorder %s17, 0
      %p89 = por %p87, %p88
      %p90 = scmp.ne.s32.totalorder %s79, %s82
      %p91 = scmp.eq.s32.totalorder %s22, 1
      %p92 = por %p90, %p91
      %p93 = scmp.ne.s32.totalorder %s82, %s83
      %p94 = scmp.eq.s32.totalorder %s22, 0
      %p95 = por %p93, %p94
      %p96 = scmp.ne.s32.totalorder %s82, %s83
      %p97 = scmp.eq.s32.totalorder %s23, 1
      %p98 = por %p96, %p97
      %p100 = scmp.ne.s32.totalorder %s83, %s99
      %p101 = scmp.eq.s32.totalorder %s23, 0
      %p102 = por %p100, %p101
      %p103 = scmp.le.s32.totalorder 1, %s17
      %p104 = scmp.lt.s32.totalorder %s17, 3
      %p105 = pnand %p103, %p104
      %p106 = pneg %p105
      // Predicated region
      $region9: #{tpu_custom_call.1} parent=5 // pred_check
        _
      $region10: #{tpu_custom_call.1} parent=5 // pred_check_branch
        %108 = sbr.rel (%p105) target = $region12
      $region11: #{tpu_custom_call.1} parent=5 // pred_region
        %s109 = ssub.s32 %s17, 1
      $region12: #{tpu_custom_call.1} parent=5 // pred_fallthru
        _
      %p110 = scmp.lt.s32.totalorder %s17, 2
      // Predicated region
      $region13: #{tpu_custom_call.1} parent=5 // pred_check
        %p111 = pneg %p110
      $region14: #{tpu_custom_call.1} parent=5 // pred_check_branch
        %113 = sbr.rel (%p111) target = $region16
      $region15: #{tpu_custom_call.1} parent=5 // pred_region
        // Predicated region
        $region17: #{tpu_custom_call.1} parent=15 // pred_check
          %p114 = pneg %p37
        $region18: #{tpu_custom_call.1} parent=15 // pred_check_branch
          %116 = sbr.rel (%p114) target = $region20
        $region19: #{tpu_custom_call.1} parent=15 // pred_region
          %s117 = sand.u32 %s27, 1
          %s118 = scalar_lea.sflag [#allocation3], %s117
          %s119 = sand.u32 %s27, 1
          %s120 = smul.addr %s119, 1152
          %s121 = scalar_lea.vmem [#allocation2], %s120
          %s122 = smul.u32 288, %s17
          %s124 = ssub.s32 18432, 18432
          %125 = vsyncadd %s118, %s124
          %s126 = smul.addr %s122, 64
          %s127 = scalar_lea.hbm %s0, %s126
          %s128 = sshll.u32 %s121, 4
          %s129 = int_to_ptr.vmem [resolvable:$true] %s128
          %134 = dma.hbm_to_vmem [thread:$0]  %s127, 18432, %s129, %s118, 64, 64, 4
        $region20: #{tpu_custom_call.1} parent=15 // pred_fallthru
          _
        // Predicated region
        $region21: #{tpu_custom_call.1} parent=15 // pred_check
          %p135 = pneg %p63
        $region22: #{tpu_custom_call.1} parent=15 // pred_check_branch
          %137 = sbr.rel (%p135) target = $region24
        $region23: #{tpu_custom_call.1} parent=15 // pred_region
          %s138 = sand.u32 %s53, 1
          %s139 = scalar_lea.sflag [#allocation6], %s138
          %s140 = sand.u32 %s53, 1
          %s141 = smul.addr %s140, 1152
          %s142 = scalar_lea.vmem [#allocation5], %s141
          %s143 = smul.u32 288, %s17
          %s145 = ssub.s32 18432, 18432
          %146 = vsyncadd %s139, %s145
          %s147 = smul.addr %s143, 64
          %s148 = scalar_lea.hbm %s1, %s147
          %s149 = sshll.u32 %s142, 4
          %s150 = int_to_ptr.vmem [resolvable:$true] %s149
          %155 = dma.hbm_to_vmem [thread:$0]  %s148, 18432, %s150, %s139, 64, 64, 4
        $region24: #{tpu_custom_call.1} parent=15 // pred_fallthru
          _
      $region16: #{tpu_custom_call.1} parent=5 // pred_fallthru
        _
      %p156 = scmp.le.s32.totalorder 1, %s17
      %p157 = scmp.lt.s32.totalorder %s17, 3
      %p158 = pnand %p156, %p157
      %p159 = pneg %p158
      // Predicated region
      $region25: #{tpu_custom_call.1} parent=5 // pred_check
        _
      $region26: #{tpu_custom_call.1} parent=5 // pred_check_branch
        %161 = sbr.rel (%p158) target = $region28
      $region27: #{tpu_custom_call.1} parent=5 // pred_region
        %s162 = ssub.s32 %s17, 1
        %s163 = sand.u32 %s30, 1
        %s164 = scalar_lea.sflag [#allocation3], %s163
        %s165 = sand.u32 %s30, 1
        %s166 = smul.addr %s165, 1152
        %s167 = scalar_lea.vmem [#allocation2], %s166
        // Predicated region
        $region29: #{tpu_custom_call.1} parent=27 // pred_check
          %p168 = pneg %p43
        $region30: #{tpu_custom_call.1} parent=27 // pred_check_branch
          %170 = sbr.rel (%p168) target = $region32
        $region31: #{tpu_custom_call.1} parent=27 // pred_region
          %171 = dma.done %s164, 18432
        $region32: #{tpu_custom_call.1} parent=27 // pred_fallthru
          _
        %s172 = sand.u32 %s56, 1
        %s173 = scalar_lea.sflag [#allocation6], %s172
        %s174 = sand.u32 %s56, 1
        %s175 = smul.addr %s174, 1152
        %s176 = scalar_lea.vmem [#allocation5], %s175
        // Predicated region
        $region33: #{tpu_custom_call.1} parent=27 // pred_check
          %p177 = pneg %p69
        $region34: #{tpu_custom_call.1} parent=27 // pred_check_branch
          %179 = sbr.rel (%p177) target = $region36
        $region35: #{tpu_custom_call.1} parent=27 // pred_region
          %180 = dma.done %s173, 18432
        $region36: #{tpu_custom_call.1} parent=27 // pred_fallthru
          _
        %s181 = sand.u32 %s30, 1
        %s182 = scalar_lea.sflag [#allocation3], %s181
        %s183 = sand.u32 %s30, 1
        %s184 = smul.addr %s183, 1152
        %s185 = scalar_lea.vmem [#allocation2], %s184
        %p186 = pneg %p43
        %p187 = pneg %p40
        %s188 = sand.u32 %s56, 1
        %s189 = scalar_lea.sflag [#allocation6], %s188
        %s190 = sand.u32 %s56, 1
        %s191 = smul.addr %s190, 1152
        %s192 = scalar_lea.vmem [#allocation5], %s191
        %p193 = pneg %p69
        %p194 = pneg %p66
        %p195 = pneg %p95
        %p196 = pneg %p92
        %s197 = sand.u32 %s82, 1
        %s198 = scalar_lea.sflag [#allocation4], %s197
        %s199 = sand.u32 %s82, 1
        %s200 = smul.addr %s199, 2304
        %s201 = scalar_lea.vmem [#allocation7], %s200
        %s202 = smul.u32 288, %s22
        %s203 = smul.u32 288, %s22
        %s204 = smul.u32 288, %s22
        %v205 = vld [vmem:[%s167] sm:$0xf]
        %v206 = vld [vmem:[%s167 + $0x4] sm:$0xf]
        %v207 = vld [vmem:[%s167 + $0x8] sm:$0xf]
        %v208 = vld [vmem:[%s167 + $0xc] sm:$0xf]
        %v209 = vld [vmem:[%s167 + $0x10] sm:$0xf]
        %v210 = vld [vmem:[%s167 + $0x14] sm:$0xf]
        %v211 = vld [vmem:[%s167 + $0x18] sm:$0xf]
        %v212 = vld [vmem:[%s167 + $0x1c] sm:$0xf]
        %v213 = vld [vmem:[%s167 + $0x20] sm:$0xf]
        %v214 = vld [vmem:[%s167 + $0x24] sm:$0xf]
        %v215 = vld [vmem:[%s167 + $0x28] sm:$0xf]
        %v216 = vld [vmem:[%s167 + $0x2c] sm:$0xf]
        %v217 = vld [vmem:[%s167 + $0x30] sm:$0xf]
        %v218 = vld [vmem:[%s167 + $0x34] sm:$0xf]
        %v219 = vld [vmem:[%s167 + $0x38] sm:$0xf]
        %v220 = vld [vmem:[%s167 + $0x3c] sm:$0xf]
        %v221 = vld [vmem:[%s167 + $0x40] sm:$0xf]
        %v222 = vld [vmem:[%s167 + $0x44] sm:$0xf]
        %v223 = vld [vmem:[%s167 + $0x48] sm:$0xf]
        %v224 = vld [vmem:[%s167 + $0x4c] sm:$0xf]
        %v225 = vld [vmem:[%s167 + $0x50] sm:$0xf]
        %v226 = vld [vmem:[%s167 + $0x54] sm:$0xf]
        %v227 = vld [vmem:[%s167 + $0x58] sm:$0xf]
        %v228 = vld [vmem:[%s167 + $0x5c] sm:$0xf]
        %v229 = vld [vmem:[%s167 + $0x60] sm:$0xf]
        %v230 = vld [vmem:[%s167 + $0x64] sm:$0xf]
        %v231 = vld [vmem:[%s167 + $0x68] sm:$0xf]
        %v232 = vld [vmem:[%s167 + $0x6c] sm:$0xf]
        %v233 = vld [vmem:[%s167 + $0x70] sm:$0xf]
        %v234 = vld [vmem:[%s167 + $0x74] sm:$0xf]
        %v235 = vld [vmem:[%s167 + $0x78] sm:$0xf]
        %v236 = vld [vmem:[%s167 + $0x7c] sm:$0xf]
        %v237 = vld [vmem:[%s167 + $0x80] sm:$0xf]
        %v238 = vld [vmem:[%s167 + $0x84] sm:$0xf]
        %v239 = vld [vmem:[%s167 + $0x88] sm:$0xf]
        %v240 = vld [vmem:[%s167 + $0x8c] sm:$0xf]
        %v241 = vld [vmem:[%s167 + $0x90] sm:$0xf]
        %v242 = vld [vmem:[%s167 + $0x94] sm:$0xf]
        %v243 = vld [vmem:[%s167 + $0x98] sm:$0xf]
        %v244 = vld [vmem:[%s167 + $0x9c] sm:$0xf]
        %v245 = vld [vmem:[%s167 + $0xa0] sm:$0xf]
        %v246 = vld [vmem:[%s167 + $0xa4] sm:$0xf]
        %v247 = vld [vmem:[%s167 + $0xa8] sm:$0xf]
        %v248 = vld [vmem:[%s167 + $0xac] sm:$0xf]
        %v249 = vld [vmem:[%s167 + $0xb0] sm:$0xf]
        %v250 = vld [vmem:[%s167 + $0xb4] sm:$0xf]
        %v251 = vld [vmem:[%s167 + $0xb8] sm:$0xf]
        %v252 = vld [vmem:[%s167 + $0xbc] sm:$0xf]
        %v253 = vld [vmem:[%s167 + $0xc0] sm:$0xf]
        %v254 = vld [vmem:[%s167 + $0xc4] sm:$0xf]
        %v255 = vld [vmem:[%s167 + $0xc8] sm:$0xf]
        %v256 = vld [vmem:[%s167 + $0xcc] sm:$0xf]
        %v257 = vld [vmem:[%s167 + $0xd0] sm:$0xf]
        %v258 = vld [vmem:[%s167 + $0xd4] sm:$0xf]
        %v259 = vld [vmem:[%s167 + $0xd8] sm:$0xf]
        %v260 = vld [vmem:[%s167 + $0xdc] sm:$0xf]
        %v261 = vld [vmem:[%s167 + $0xe0] sm:$0xf]
        %v262 = vld [vmem:[%s167 + $0xe4] sm:$0xf]
        %v263 = vld [vmem:[%s167 + $0xe8] sm:$0xf]
        %v264 = vld [vmem:[%s167 + $0xec] sm:$0xf]
        %v265 = vld [vmem:[%s167 + $0xf0] sm:$0xf]
        %v266 = vld [vmem:[%s167 + $0xf4] sm:$0xf]
        %v267 = vld [vmem:[%s167 + $0xf8] sm:$0xf]
        %v268 = vld [vmem:[%s167 + $0xfc] sm:$0xf]
        %v269 = vld [vmem:[%s167 + $0x100] sm:$0xf]
        %v270 = vld [vmem:[%s167 + $0x104] sm:$0xf]
        %v271 = vld [vmem:[%s167 + $0x108] sm:$0xf]
        %v272 = vld [vmem:[%s167 + $0x10c] sm:$0xf]
        %v273 = vld [vmem:[%s167 + $0x110] sm:$0xf]
        %v274 = vld [vmem:[%s167 + $0x114] sm:$0xf]
        %v275 = vld [vmem:[%s167 + $0x118] sm:$0xf]
        %v276 = vld [vmem:[%s167 + $0x11c] sm:$0xf]
        %v277 = vld [vmem:[%s167 + $0x120] sm:$0xf]
        %v278 = vld [vmem:[%s167 + $0x124] sm:$0xf]
        %v279 = vld [vmem:[%s167 + $0x128] sm:$0xf]
        %v280 = vld [vmem:[%s167 + $0x12c] sm:$0xf]
        %v281 = vld [vmem:[%s167 + $0x130] sm:$0xf]
        %v282 = vld [vmem:[%s167 + $0x134] sm:$0xf]
        %v283 = vld [vmem:[%s167 + $0x138] sm:$0xf]
        %v284 = vld [vmem:[%s167 + $0x13c] sm:$0xf]
        %v285 = vld [vmem:[%s167 + $0x140] sm:$0xf]
        %v286 = vld [vmem:[%s167 + $0x144] sm:$0xf]
        %v287 = vld [vmem:[%s167 + $0x148] sm:$0xf]
        %v288 = vld [vmem:[%s167 + $0x14c] sm:$0xf]
        %v289 = vld [vmem:[%s167 + $0x150] sm:$0xf]
        %v290 = vld [vmem:[%s167 + $0x154] sm:$0xf]
        %v291 = vld [vmem:[%s167 + $0x158] sm:$0xf]
        %v292 = vld [vmem:[%s167 + $0x15c] sm:$0xf]
        %v293 = vld [vmem:[%s167 + $0x160] sm:$0xf]
        %v294 = vld [vmem:[%s167 + $0x164] sm:$0xf]
        %v295 = vld [vmem:[%s167 + $0x168] sm:$0xf]
        %v296 = vld [vmem:[%s167 + $0x16c] sm:$0xf]
        %v297 = vld [vmem:[%s167 + $0x170] sm:$0xf]
        %v298 = vld [vmem:[%s167 + $0x174] sm:$0xf]
        %v299 = vld [vmem:[%s167 + $0x178] sm:$0xf]
        %v300 = vld [vmem:[%s167 + $0x17c] sm:$0xf]
        %v301 = vld [vmem:[%s167 + $0x180] sm:$0xf]
        %v302 = vld [vmem:[%s167 + $0x184] sm:$0xf]
        %v303 = vld [vmem:[%s167 + $0x188] sm:$0xf]
        %v304 = vld [vmem:[%s167 + $0x18c] sm:$0xf]
        %v305 = vld [vmem:[%s167 + $0x190] sm:$0xf]
        %v306 = vld [vmem:[%s167 + $0x194] sm:$0xf]
        %v307 = vld [vmem:[%s167 + $0x198] sm:$0xf]
        %v308 = vld [vmem:[%s167 + $0x19c] sm:$0xf]
        %v309 = vld [vmem:[%s167 + $0x1a0] sm:$0xf]
        %v310 = vld [vmem:[%s167 + $0x1a4] sm:$0xf]
        %v311 = vld [vmem:[%s167 + $0x1a8] sm:$0xf]
        %v312 = vld [vmem:[%s167 + $0x1ac] sm:$0xf]
        %v313 = vld [vmem:[%s167 + $0x1b0] sm:$0xf]
        %v314 = vld [vmem:[%s167 + $0x1b4] sm:$0xf]
        %v315 = vld [vmem:[%s167 + $0x1b8] sm:$0xf]
        %v316 = vld [vmem:[%s167 + $0x1bc] sm:$0xf]
        %v317 = vld [vmem:[%s167 + $0x1c0] sm:$0xf]
        %v318 = vld [vmem:[%s167 + $0x1c4] sm:$0xf]
        %v319 = vld [vmem:[%s167 + $0x1c8] sm:$0xf]
        %v320 = vld [vmem:[%s167 + $0x1cc] sm:$0xf]
        %v321 = vld [vmem:[%s167 + $0x1d0] sm:$0xf]
        %v322 = vld [vmem:[%s167 + $0x1d4] sm:$0xf]
        %v323 = vld [vmem:[%s167 + $0x1d8] sm:$0xf]
        %v324 = vld [vmem:[%s167 + $0x1dc] sm:$0xf]
        %v325 = vld [vmem:[%s167 + $0x1e0] sm:$0xf]
        %v326 = vld [vmem:[%s167 + $0x1e4] sm:$0xf]
        %v327 = vld [vmem:[%s167 + $0x1e8] sm:$0xf]
        %v328 = vld [vmem:[%s167 + $0x1ec] sm:$0xf]
        %v329 = vld [vmem:[%s167 + $0x1f0] sm:$0xf]
        %v330 = vld [vmem:[%s167 + $0x1f4] sm:$0xf]
        %v331 = vld [vmem:[%s167 + $0x1f8] sm:$0xf]
        %v332 = vld [vmem:[%s167 + $0x1fc] sm:$0xf]
        %v333 = vld [vmem:[%s167 + $0x200] sm:$0xf]
        %v334 = vld [vmem:[%s167 + $0x204] sm:$0xf]
        %v335 = vld [vmem:[%s167 + $0x208] sm:$0xf]
        %v336 = vld [vmem:[%s167 + $0x20c] sm:$0xf]
        %v337 = vld [vmem:[%s167 + $0x210] sm:$0xf]
        %v338 = vld [vmem:[%s167 + $0x214] sm:$0xf]
        %v339 = vld [vmem:[%s167 + $0x218] sm:$0xf]
        %v340 = vld [vmem:[%s167 + $0x21c] sm:$0xf]
        %v341 = vld [vmem:[%s167 + $0x220] sm:$0xf]
        %v342 = vld [vmem:[%s167 + $0x224] sm:$0xf]
        %v343 = vld [vmem:[%s167 + $0x228] sm:$0xf]
        %v344 = vld [vmem:[%s167 + $0x22c] sm:$0xf]
        %v345 = vld [vmem:[%s167 + $0x230] sm:$0xf]
        %v346 = vld [vmem:[%s167 + $0x234] sm:$0xf]
        %v347 = vld [vmem:[%s167 + $0x238] sm:$0xf]
        %v348 = vld [vmem:[%s167 + $0x23c] sm:$0xf]
        %v349 = vld [vmem:[%s167 + $0x240] sm:$0xf]
        %v350 = vld [vmem:[%s167 + $0x244] sm:$0xf]
        %v351 = vld [vmem:[%s167 + $0x248] sm:$0xf]
        %v352 = vld [vmem:[%s167 + $0x24c] sm:$0xf]
        %v353 = vld [vmem:[%s167 + $0x250] sm:$0xf]
        %v354 = vld [vmem:[%s167 + $0x254] sm:$0xf]
        %v355 = vld [vmem:[%s167 + $0x258] sm:$0xf]
        %v356 = vld [vmem:[%s167 + $0x25c] sm:$0xf]
        %v357 = vld [vmem:[%s167 + $0x260] sm:$0xf]
        %v358 = vld [vmem:[%s167 + $0x264] sm:$0xf]
        %v359 = vld [vmem:[%s167 + $0x268] sm:$0xf]
        %v360 = vld [vmem:[%s167 + $0x26c] sm:$0xf]
        %v361 = vld [vmem:[%s167 + $0x270] sm:$0xf]
        %v362 = vld [vmem:[%s167 + $0x274] sm:$0xf]
        %v363 = vld [vmem:[%s167 + $0x278] sm:$0xf]
        %v364 = vld [vmem:[%s167 + $0x27c] sm:$0xf]
        %v365 = vld [vmem:[%s167 + $0x280] sm:$0xf]
        %v366 = vld [vmem:[%s167 + $0x284] sm:$0xf]
        %v367 = vld [vmem:[%s167 + $0x288] sm:$0xf]
        %v368 = vld [vmem:[%s167 + $0x28c] sm:$0xf]
        %v369 = vld [vmem:[%s167 + $0x290] sm:$0xf]
        %v370 = vld [vmem:[%s167 + $0x294] sm:$0xf]
        %v371 = vld [vmem:[%s167 + $0x298] sm:$0xf]
        %v372 = vld [vmem:[%s167 + $0x29c] sm:$0xf]
        %v373 = vld [vmem:[%s167 + $0x2a0] sm:$0xf]
        %v374 = vld [vmem:[%s167 + $0x2a4] sm:$0xf]
        %v375 = vld [vmem:[%s167 + $0x2a8] sm:$0xf]
        %v376 = vld [vmem:[%s167 + $0x2ac] sm:$0xf]
        %v377 = vld [vmem:[%s167 + $0x2b0] sm:$0xf]
        %v378 = vld [vmem:[%s167 + $0x2b4] sm:$0xf]
        %v379 = vld [vmem:[%s167 + $0x2b8] sm:$0xf]
        %v380 = vld [vmem:[%s167 + $0x2bc] sm:$0xf]
        %v381 = vld [vmem:[%s167 + $0x2c0] sm:$0xf]
        %v382 = vld [vmem:[%s167 + $0x2c4] sm:$0xf]
        %v383 = vld [vmem:[%s167 + $0x2c8] sm:$0xf]
        %v384 = vld [vmem:[%s167 + $0x2cc] sm:$0xf]
        %v385 = vld [vmem:[%s167 + $0x2d0] sm:$0xf]
        %v386 = vld [vmem:[%s167 + $0x2d4] sm:$0xf]
        %v387 = vld [vmem:[%s167 + $0x2d8] sm:$0xf]
        %v388 = vld [vmem:[%s167 + $0x2dc] sm:$0xf]
        %v389 = vld [vmem:[%s167 + $0x2e0] sm:$0xf]
        %v390 = vld [vmem:[%s167 + $0x2e4] sm:$0xf]
        %v391 = vld [vmem:[%s167 + $0x2e8] sm:$0xf]
        %v392 = vld [vmem:[%s167 + $0x2ec] sm:$0xf]
        %v393 = vld [vmem:[%s167 + $0x2f0] sm:$0xf]
        %v394 = vld [vmem:[%s167 + $0x2f4] sm:$0xf]
        %v395 = vld [vmem:[%s167 + $0x2f8] sm:$0xf]
        %v396 = vld [vmem:[%s167 + $0x2fc] sm:$0xf]
        %v397 = vld [vmem:[%s167 + $0x300] sm:$0xf]
        %v398 = vld [vmem:[%s167 + $0x304] sm:$0xf]
        %v399 = vld [vmem:[%s167 + $0x308] sm:$0xf]
        %v400 = vld [vmem:[%s167 + $0x30c] sm:$0xf]
        %v401 = vld [vmem:[%s167 + $0x310] sm:$0xf]
        %v402 = vld [vmem:[%s167 + $0x314] sm:$0xf]
        %v403 = vld [vmem:[%s167 + $0x318] sm:$0xf]
        %v404 = vld [vmem:[%s167 + $0x31c] sm:$0xf]
        %v405 = vld [vmem:[%s167 + $0x320] sm:$0xf]
        %v406 = vld [vmem:[%s167 + $0x324] sm:$0xf]
        %v407 = vld [vmem:[%s167 + $0x328] sm:$0xf]
        %v408 = vld [vmem:[%s167 + $0x32c] sm:$0xf]
        %v409 = vld [vmem:[%s167 + $0x330] sm:$0xf]
        %v410 = vld [vmem:[%s167 + $0x334] sm:$0xf]
        %v411 = vld [vmem:[%s167 + $0x338] sm:$0xf]
        %v412 = vld [vmem:[%s167 + $0x33c] sm:$0xf]
        %v413 = vld [vmem:[%s167 + $0x340] sm:$0xf]
        %v414 = vld [vmem:[%s167 + $0x344] sm:$0xf]
        %v415 = vld [vmem:[%s167 + $0x348] sm:$0xf]
        %v416 = vld [vmem:[%s167 + $0x34c] sm:$0xf]
        %v417 = vld [vmem:[%s167 + $0x350] sm:$0xf]
        %v418 = vld [vmem:[%s167 + $0x354] sm:$0xf]
        %v419 = vld [vmem:[%s167 + $0x358] sm:$0xf]
        %v420 = vld [vmem:[%s167 + $0x35c] sm:$0xf]
        %v421 = vld [vmem:[%s167 + $0x360] sm:$0xf]
        %v422 = vld [vmem:[%s167 + $0x364] sm:$0xf]
        %v423 = vld [vmem:[%s167 + $0x368] sm:$0xf]
        %v424 = vld [vmem:[%s167 + $0x36c] sm:$0xf]
        %v425 = vld [vmem:[%s167 + $0x370] sm:$0xf]
        %v426 = vld [vmem:[%s167 + $0x374] sm:$0xf]
        %v427 = vld [vmem:[%s167 + $0x378] sm:$0xf]
        %v428 = vld [vmem:[%s167 + $0x37c] sm:$0xf]
        %v429 = vld [vmem:[%s167 + $0x380] sm:$0xf]
        %v430 = vld [vmem:[%s167 + $0x384] sm:$0xf]
        %v431 = vld [vmem:[%s167 + $0x388] sm:$0xf]
        %v432 = vld [vmem:[%s167 + $0x38c] sm:$0xf]
        %v433 = vld [vmem:[%s167 + $0x390] sm:$0xf]
        %v434 = vld [vmem:[%s167 + $0x394] sm:$0xf]
        %v435 = vld [vmem:[%s167 + $0x398] sm:$0xf]
        %v436 = vld [vmem:[%s167 + $0x39c] sm:$0xf]
        %v437 = vld [vmem:[%s167 + $0x3a0] sm:$0xf]
        %v438 = vld [vmem:[%s167 + $0x3a4] sm:$0xf]
        %v439 = vld [vmem:[%s167 + $0x3a8] sm:$0xf]
        %v440 = vld [vmem:[%s167 + $0x3ac] sm:$0xf]
        %v441 = vld [vmem:[%s167 + $0x3b0] sm:$0xf]
        %v442 = vld [vmem:[%s167 + $0x3b4] sm:$0xf]
        %v443 = vld [vmem:[%s167 + $0x3b8] sm:$0xf]
        %v444 = vld [vmem:[%s167 + $0x3bc] sm:$0xf]
        %v445 = vld [vmem:[%s167 + $0x3c0] sm:$0xf]
        %v446 = vld [vmem:[%s167 + $0x3c4] sm:$0xf]
        %v447 = vld [vmem:[%s167 + $0x3c8] sm:$0xf]
        %v448 = vld [vmem:[%s167 + $0x3cc] sm:$0xf]
        %v449 = vld [vmem:[%s167 + $0x3d0] sm:$0xf]
        %v450 = vld [vmem:[%s167 + $0x3d4] sm:$0xf]
        %v451 = vld [vmem:[%s167 + $0x3d8] sm:$0xf]
        %v452 = vld [vmem:[%s167 + $0x3dc] sm:$0xf]
        %v453 = vld [vmem:[%s167 + $0x3e0] sm:$0xf]
        %v454 = vld [vmem:[%s167 + $0x3e4] sm:$0xf]
        %v455 = vld [vmem:[%s167 + $0x3e8] sm:$0xf]
        %v456 = vld [vmem:[%s167 + $0x3ec] sm:$0xf]
        %v457 = vld [vmem:[%s167 + $0x3f0] sm:$0xf]
        %v458 = vld [vmem:[%s167 + $0x3f4] sm:$0xf]
        %v459 = vld [vmem:[%s167 + $0x3f8] sm:$0xf]
        %v460 = vld [vmem:[%s167 + $0x3fc] sm:$0xf]
        %v461 = vld [vmem:[%s167 + $0x400] sm:$0xf]
        %v462 = vld [vmem:[%s167 + $0x404] sm:$0xf]
        %v463 = vld [vmem:[%s167 + $0x408] sm:$0xf]
        %v464 = vld [vmem:[%s167 + $0x40c] sm:$0xf]
        %v465 = vld [vmem:[%s167 + $0x410] sm:$0xf]
        %v466 = vld [vmem:[%s167 + $0x414] sm:$0xf]
        %v467 = vld [vmem:[%s167 + $0x418] sm:$0xf]
        %v468 = vld [vmem:[%s167 + $0x41c] sm:$0xf]
        %v469 = vld [vmem:[%s167 + $0x420] sm:$0xf]
        %v470 = vld [vmem:[%s167 + $0x424] sm:$0xf]
        %v471 = vld [vmem:[%s167 + $0x428] sm:$0xf]
        %v472 = vld [vmem:[%s167 + $0x42c] sm:$0xf]
        %v473 = vld [vmem:[%s167 + $0x430] sm:$0xf]
        %v474 = vld [vmem:[%s167 + $0x434] sm:$0xf]
        %v475 = vld [vmem:[%s167 + $0x438] sm:$0xf]
        %v476 = vld [vmem:[%s167 + $0x43c] sm:$0xf]
        %v477 = vld [vmem:[%s167 + $0x440] sm:$0xf]
        %v478 = vld [vmem:[%s167 + $0x444] sm:$0xf]
        %v479 = vld [vmem:[%s167 + $0x448] sm:$0xf]
        %v480 = vld [vmem:[%s167 + $0x44c] sm:$0xf]
        %v481 = vld [vmem:[%s167 + $0x450] sm:$0xf]
        %v482 = vld [vmem:[%s167 + $0x454] sm:$0xf]
        %v483 = vld [vmem:[%s167 + $0x458] sm:$0xf]
        %v484 = vld [vmem:[%s167 + $0x45c] sm:$0xf]
        %v485 = vld [vmem:[%s167 + $0x460] sm:$0xf]
        %v486 = vld [vmem:[%s167 + $0x464] sm:$0xf]
        %v487 = vld [vmem:[%s167 + $0x468] sm:$0xf]
        %v488 = vld [vmem:[%s167 + $0x46c] sm:$0xf]
        %v489 = vld [vmem:[%s167 + $0x470] sm:$0xf]
        %v490 = vld [vmem:[%s167 + $0x474] sm:$0xf]
        %v491 = vld [vmem:[%s167 + $0x478] sm:$0xf]
        %v492 = vld [vmem:[%s167 + $0x47c] sm:$0xf]
        %v493 = vunpack.c.l.bf16 %v205
        %v494 = vunpack.c.l.bf16 %v206
        %v495 = vunpack.c.l.bf16 %v207
        %v496 = vunpack.c.l.bf16 %v208
        %v497 = vunpack.c.l.bf16 %v209
        %v498 = vunpack.c.l.bf16 %v210
        %v499 = vunpack.c.l.bf16 %v211
        %v500 = vunpack.c.l.bf16 %v212
        %v501 = vunpack.c.l.bf16 %v213
        %v502 = vunpack.c.l.bf16 %v214
        %v503 = vunpack.c.l.bf16 %v215
        %v504 = vunpack.c.l.bf16 %v216
        %v505 = vunpack.c.l.bf16 %v217
        %v506 = vunpack.c.l.bf16 %v218
        %v507 = vunpack.c.l.bf16 %v219
        %v508 = vunpack.c.l.bf16 %v220
        %v509 = vunpack.c.l.bf16 %v221
        %v510 = vunpack.c.l.bf16 %v222
        %v511 = vunpack.c.l.bf16 %v223
        %v512 = vunpack.c.l.bf16 %v224
        %v513 = vunpack.c.l.bf16 %v225
        %v514 = vunpack.c.l.bf16 %v226
        %v515 = vunpack.c.l.bf16 %v227
        %v516 = vunpack.c.l.bf16 %v228
        %v517 = vunpack.c.l.bf16 %v229
        %v518 = vunpack.c.l.bf16 %v230
        %v519 = vunpack.c.l.bf16 %v231
        %v520 = vunpack.c.l.bf16 %v232
        %v521 = vunpack.c.l.bf16 %v233
        %v522 = vunpack.c.l.bf16 %v234
        %v523 = vunpack.c.l.bf16 %v235
        %v524 = vunpack.c.l.bf16 %v236
        %v525 = vunpack.c.l.bf16 %v237
        %v526 = vunpack.c.l.bf16 %v238
        %v527 = vunpack.c.l.bf16 %v239
        %v528 = vunpack.c.l.bf16 %v240
        %v529 = vunpack.c.l.bf16 %v241
        %v530 = vunpack.c.l.bf16 %v242
        %v531 = vunpack.c.l.bf16 %v243
        %v532 = vunpack.c.l.bf16 %v244
        %v533 = vunpack.c.l.bf16 %v245
        %v534 = vunpack.c.l.bf16 %v246
        %v535 = vunpack.c.l.bf16 %v247
        %v536 = vunpack.c.l.bf16 %v248
        %v537 = vunpack.c.l.bf16 %v249
        %v538 = vunpack.c.l.bf16 %v250
        %v539 = vunpack.c.l.bf16 %v251
        %v540 = vunpack.c.l.bf16 %v252
        %v541 = vunpack.c.l.bf16 %v253
        %v542 = vunpack.c.l.bf16 %v254
        %v543 = vunpack.c.l.bf16 %v255
        %v544 = vunpack.c.l.bf16 %v256
        %v545 = vunpack.c.l.bf16 %v257
        %v546 = vunpack.c.l.bf16 %v258
        %v547 = vunpack.c.l.bf16 %v259
        %v548 = vunpack.c.l.bf16 %v260
        %v549 = vunpack.c.l.bf16 %v261
        %v550 = vunpack.c.l.bf16 %v262
        %v551 = vunpack.c.l.bf16 %v263
        %v552 = vunpack.c.l.bf16 %v264
        %v553 = vunpack.c.l.bf16 %v265
        %v554 = vunpack.c.l.bf16 %v266
        %v555 = vunpack.c.l.bf16 %v267
        %v556 = vunpack.c.l.bf16 %v268
        %v557 = vunpack.c.l.bf16 %v269
        %v558 = vunpack.c.l.bf16 %v270
        %v559 = vunpack.c.l.bf16 %v271
        %v560 = vunpack.c.l.bf16 %v272
        %v561 = vunpack.c.l.bf16 %v273
        %v562 = vunpack.c.l.bf16 %v274
        %v563 = vunpack.c.l.bf16 %v275
        %v564 = vunpack.c.l.bf16 %v276
        %v565 = vunpack.c.l.bf16 %v277
        %v566 = vunpack.c.l.bf16 %v278
        %v567 = vunpack.c.l.bf16 %v279
        %v568 = vunpack.c.l.bf16 %v280
        %v569 = vunpack.c.l.bf16 %v281
        %v570 = vunpack.c.l.bf16 %v282
        %v571 = vunpack.c.l.bf16 %v283
        %v572 = vunpack.c.l.bf16 %v284
        %v573 = vunpack.c.l.bf16 %v285
        %v574 = vunpack.c.l.bf16 %v286
        %v575 = vunpack.c.l.bf16 %v287
        %v576 = vunpack.c.l.bf16 %v288
        %v577 = vunpack.c.l.bf16 %v289
        %v578 = vunpack.c.l.bf16 %v290
        %v579 = vunpack.c.l.bf16 %v291
        %v580 = vunpack.c.l.bf16 %v292
        %v581 = vunpack.c.l.bf16 %v293
        %v582 = vunpack.c.l.bf16 %v294
        %v583 = vunpack.c.l.bf16 %v295
        %v584 = vunpack.c.l.bf16 %v296
        %v585 = vunpack.c.l.bf16 %v297
        %v586 = vunpack.c.l.bf16 %v298
        %v587 = vunpack.c.l.bf16 %v299
        %v588 = vunpack.c.l.bf16 %v300
        %v589 = vunpack.c.l.bf16 %v301
        %v590 = vunpack.c.l.bf16 %v302
        %v591 = vunpack.c.l.bf16 %v303
        %v592 = vunpack.c.l.bf16 %v304
        %v593 = vunpack.c.l.bf16 %v305
        %v594 = vunpack.c.l.bf16 %v306
        %v595 = vunpack.c.l.bf16 %v307
        %v596 = vunpack.c.l.bf16 %v308
        %v597 = vunpack.c.l.bf16 %v309
        %v598 = vunpack.c.l.bf16 %v310
        %v599 = vunpack.c.l.bf16 %v311
        %v600 = vunpack.c.l.bf16 %v312
        %v601 = vunpack.c.l.bf16 %v313
        %v602 = vunpack.c.l.bf16 %v314
        %v603 = vunpack.c.l.bf16 %v315
        %v604 = vunpack.c.l.bf16 %v316
        %v605 = vunpack.c.l.bf16 %v317
        %v606 = vunpack.c.l.bf16 %v318
        %v607 = vunpack.c.l.bf16 %v319
        %v608 = vunpack.c.l.bf16 %v320
        %v609 = vunpack.c.l.bf16 %v321
        %v610 = vunpack.c.l.bf16 %v322
        %v611 = vunpack.c.l.bf16 %v323
        %v612 = vunpack.c.l.bf16 %v324
        %v613 = vunpack.c.l.bf16 %v325
        %v614 = vunpack.c.l.bf16 %v326
        %v615 = vunpack.c.l.bf16 %v327
        %v616 = vunpack.c.l.bf16 %v328
        %v617 = vunpack.c.l.bf16 %v329
        %v618 = vunpack.c.l.bf16 %v330
        %v619 = vunpack.c.l.bf16 %v331
        %v620 = vunpack.c.l.bf16 %v332
        %v621 = vunpack.c.l.bf16 %v333
        %v622 = vunpack.c.l.bf16 %v334
        %v623 = vunpack.c.l.bf16 %v335
        %v624 = vunpack.c.l.bf16 %v336
        %v625 = vunpack.c.l.bf16 %v337
        %v626 = vunpack.c.l.bf16 %v338
        %v627 = vunpack.c.l.bf16 %v339
        %v628 = vunpack.c.l.bf16 %v340
        %v629 = vunpack.c.l.bf16 %v341
        %v630 = vunpack.c.l.bf16 %v342
        %v631 = vunpack.c.l.bf16 %v343
        %v632 = vunpack.c.l.bf16 %v344
        %v633 = vunpack.c.l.bf16 %v345
        %v634 = vunpack.c.l.bf16 %v346
        %v635 = vunpack.c.l.bf16 %v347
        %v636 = vunpack.c.l.bf16 %v348
        %v637 = vunpack.c.l.bf16 %v349
        %v638 = vunpack.c.l.bf16 %v350
        %v639 = vunpack.c.l.bf16 %v351
        %v640 = vunpack.c.l.bf16 %v352
        %v641 = vunpack.c.l.bf16 %v353
        %v642 = vunpack.c.l.bf16 %v354
        %v643 = vunpack.c.l.bf16 %v355
        %v644 = vunpack.c.l.bf16 %v356
        %v645 = vunpack.c.l.bf16 %v357
        %v646 = vunpack.c.l.bf16 %v358
        %v647 = vunpack.c.l.bf16 %v359
        %v648 = vunpack.c.l.bf16 %v360
        %v649 = vunpack.c.l.bf16 %v361
        %v650 = vunpack.c.l.bf16 %v362
        %v651 = vunpack.c.l.bf16 %v363
        %v652 = vunpack.c.l.bf16 %v364
        %v653 = vunpack.c.l.bf16 %v365
        %v654 = vunpack.c.l.bf16 %v366
        %v655 = vunpack.c.l.bf16 %v367
        %v656 = vunpack.c.l.bf16 %v368
        %v657 = vunpack.c.l.bf16 %v369
        %v658 = vunpack.c.l.bf16 %v370
        %v659 = vunpack.c.l.bf16 %v371
        %v660 = vunpack.c.l.bf16 %v372
        %v661 = vunpack.c.l.bf16 %v373
        %v662 = vunpack.c.l.bf16 %v374
        %v663 = vunpack.c.l.bf16 %v375
        %v664 = vunpack.c.l.bf16 %v376
        %v665 = vunpack.c.l.bf16 %v377
        %v666 = vunpack.c.l.bf16 %v378
        %v667 = vunpack.c.l.bf16 %v379
        %v668 = vunpack.c.l.bf16 %v380
        %v669 = vunpack.c.l.bf16 %v381
        %v670 = vunpack.c.l.bf16 %v382
        %v671 = vunpack.c.l.bf16 %v383
        %v672 = vunpack.c.l.bf16 %v384
        %v673 = vunpack.c.l.bf16 %v385
        %v674 = vunpack.c.l.bf16 %v386
        %v675 = vunpack.c.l.bf16 %v387
        %v676 = vunpack.c.l.bf16 %v388
        %v677 = vunpack.c.l.bf16 %v389
        %v678 = vunpack.c.l.bf16 %v390
        %v679 = vunpack.c.l.bf16 %v391
        %v680 = vunpack.c.l.bf16 %v392
        %v681 = vunpack.c.l.bf16 %v393
        %v682 = vunpack.c.l.bf16 %v394
        %v683 = vunpack.c.l.bf16 %v395
        %v684 = vunpack.c.l.bf16 %v396
        %v685 = vunpack.c.l.bf16 %v397
        %v686 = vunpack.c.l.bf16 %v398
        %v687 = vunpack.c.l.bf16 %v399
        %v688 = vunpack.c.l.bf16 %v400
        %v689 = vunpack.c.l.bf16 %v401
        %v690 = vunpack.c.l.bf16 %v402
        %v691 = vunpack.c.l.bf16 %v403
        %v692 = vunpack.c.l.bf16 %v404
        %v693 = vunpack.c.l.bf16 %v405
        %v694 = vunpack.c.l.bf16 %v406
        %v695 = vunpack.c.l.bf16 %v407
        %v696 = vunpack.c.l.bf16 %v408
        %v697 = vunpack.c.l.bf16 %v409
        %v698 = vunpack.c.l.bf16 %v410
        %v699 = vunpack.c.l.bf16 %v411
        %v700 = vunpack.c.l.bf16 %v412
        %v701 = vunpack.c.l.bf16 %v413
        %v702 = vunpack.c.l.bf16 %v414
        %v703 = vunpack.c.l.bf16 %v415
        %v704 = vunpack.c.l.bf16 %v416
        %v705 = vunpack.c.l.bf16 %v417
        %v706 = vunpack.c.l.bf16 %v418
        %v707 = vunpack.c.l.bf16 %v419
        %v708 = vunpack.c.l.bf16 %v420
        %v709 = vunpack.c.l.bf16 %v421
        %v710 = vunpack.c.l.bf16 %v422
        %v711 = vunpack.c.l.bf16 %v423
        %v712 = vunpack.c.l.bf16 %v424
        %v713 = vunpack.c.l.bf16 %v425
        %v714 = vunpack.c.l.bf16 %v426
        %v715 = vunpack.c.l.bf16 %v427
        %v716 = vunpack.c.l.bf16 %v428
        %v717 = vunpack.c.l.bf16 %v429
        %v718 = vunpack.c.l.bf16 %v430
        %v719 = vunpack.c.l.bf16 %v431
        %v720 = vunpack.c.l.bf16 %v432
        %v721 = vunpack.c.l.bf16 %v433
        %v722 = vunpack.c.l.bf16 %v434
        %v723 = vunpack.c.l.bf16 %v435
        %v724 = vunpack.c.l.bf16 %v436
        %v725 = vunpack.c.l.bf16 %v437
        %v726 = vunpack.c.l.bf16 %v438
        %v727 = vunpack.c.l.bf16 %v439
        %v728 = vunpack.c.l.bf16 %v440
        %v729 = vunpack.c.l.bf16 %v441
        %v730 = vunpack.c.l.bf16 %v442
        %v731 = vunpack.c.l.bf16 %v443
        %v732 = vunpack.c.l.bf16 %v444
        %v733 = vunpack.c.l.bf16 %v445
        %v734 = vunpack.c.l.bf16 %v446
        %v735 = vunpack.c.l.bf16 %v447
        %v736 = vunpack.c.l.bf16 %v448
        %v737 = vunpack.c.l.bf16 %v449
        %v738 = vunpack.c.l.bf16 %v450
        %v739 = vunpack.c.l.bf16 %v451
        %v740 = vunpack.c.l.bf16 %v452
        %v741 = vunpack.c.l.bf16 %v453
        %v742 = vunpack.c.l.bf16 %v454
        %v743 = vunpack.c.l.bf16 %v455
        %v744 = vunpack.c.l.bf16 %v456
        %v745 = vunpack.c.l.bf16 %v457
        %v746 = vunpack.c.l.bf16 %v458
        %v747 = vunpack.c.l.bf16 %v459
        %v748 = vunpack.c.l.bf16 %v460
        %v749 = vunpack.c.l.bf16 %v461
        %v750 = vunpack.c.l.bf16 %v462
        %v751 = vunpack.c.l.bf16 %v463
        %v752 = vunpack.c.l.bf16 %v464
        %v753 = vunpack.c.l.bf16 %v465
        %v754 = vunpack.c.l.bf16 %v466
        %v755 = vunpack.c.l.bf16 %v467
        %v756 = vunpack.c.l.bf16 %v468
        %v757 = vunpack.c.l.bf16 %v469
        %v758 = vunpack.c.l.bf16 %v470
        %v759 = vunpack.c.l.bf16 %v471
        %v760 = vunpack.c.l.bf16 %v472
        %v761 = vunpack.c.l.bf16 %v473
        %v762 = vunpack.c.l.bf16 %v474
        %v763 = vunpack.c.l.bf16 %v475
        %v764 = vunpack.c.l.bf16 %v476
        %v765 = vunpack.c.l.bf16 %v477
        %v766 = vunpack.c.l.bf16 %v478
        %v767 = vunpack.c.l.bf16 %v479
        %v768 = vunpack.c.l.bf16 %v480
        %v769 = vunpack.c.l.bf16 %v481
        %v770 = vunpack.c.l.bf16 %v482
        %v771 = vunpack.c.l.bf16 %v483
        %v772 = vunpack.c.l.bf16 %v484
        %v773 = vunpack.c.l.bf16 %v485
        %v774 = vunpack.c.l.bf16 %v486
        %v775 = vunpack.c.l.bf16 %v487
        %v776 = vunpack.c.l.bf16 %v488
        %v777 = vunpack.c.l.bf16 %v489
        %v778 = vunpack.c.l.bf16 %v490
        %v779 = vunpack.c.l.bf16 %v491
        %v780 = vunpack.c.l.bf16 %v492
        %v781 = vld [vmem:[%s176] sm:$0xf]
        %v782 = vld [vmem:[%s176 + $0x4] sm:$0xf]
        %v783 = vld [vmem:[%s176 + $0x8] sm:$0xf]
        %v784 = vld [vmem:[%s176 + $0xc] sm:$0xf]
        %v785 = vld [vmem:[%s176 + $0x10] sm:$0xf]
        %v786 = vld [vmem:[%s176 + $0x14] sm:$0xf]
        %v787 = vld [vmem:[%s176 + $0x18] sm:$0xf]
        %v788 = vld [vmem:[%s176 + $0x1c] sm:$0xf]
        %v789 = vld [vmem:[%s176 + $0x20] sm:$0xf]
        %v790 = vld [vmem:[%s176 + $0x24] sm:$0xf]
        %v791 = vld [vmem:[%s176 + $0x28] sm:$0xf]
        %v792 = vld [vmem:[%s176 + $0x2c] sm:$0xf]
        %v793 = vld [vmem:[%s176 + $0x30] sm:$0xf]
        %v794 = vld [vmem:[%s176 + $0x34] sm:$0xf]
        %v795 = vld [vmem:[%s176 + $0x38] sm:$0xf]
        %v796 = vld [vmem:[%s176 + $0x3c] sm:$0xf]
        %v797 = vld [vmem:[%s176 + $0x40] sm:$0xf]
        %v798 = vld [vmem:[%s176 + $0x44] sm:$0xf]
        %v799 = vld [vmem:[%s176 + $0x48] sm:$0xf]
        %v800 = vld [vmem:[%s176 + $0x4c] sm:$0xf]
        %v801 = vld [vmem:[%s176 + $0x50] sm:$0xf]
        %v802 = vld [vmem:[%s176 + $0x54] sm:$0xf]
        %v803 = vld [vmem:[%s176 + $0x58] sm:$0xf]
        %v804 = vld [vmem:[%s176 + $0x5c] sm:$0xf]
        %v805 = vld [vmem:[%s176 + $0x60] sm:$0xf]
        %v806 = vld [vmem:[%s176 + $0x64] sm:$0xf]
        %v807 = vld [vmem:[%s176 + $0x68] sm:$0xf]
        %v808 = vld [vmem:[%s176 + $0x6c] sm:$0xf]
        %v809 = vld [vmem:[%s176 + $0x70] sm:$0xf]
        %v810 = vld [vmem:[%s176 + $0x74] sm:$0xf]
        %v811 = vld [vmem:[%s176 + $0x78] sm:$0xf]
        %v812 = vld [vmem:[%s176 + $0x7c] sm:$0xf]
        %v813 = vld [vmem:[%s176 + $0x80] sm:$0xf]
        %v814 = vld [vmem:[%s176 + $0x84] sm:$0xf]
        %v815 = vld [vmem:[%s176 + $0x88] sm:$0xf]
        %v816 = vld [vmem:[%s176 + $0x8c] sm:$0xf]
        %v817 = vld [vmem:[%s176 + $0x90] sm:$0xf]
        %v818 = vld [vmem:[%s176 + $0x94] sm:$0xf]
        %v819 = vld [vmem:[%s176 + $0x98] sm:$0xf]
        %v820 = vld [vmem:[%s176 + $0x9c] sm:$0xf]
        %v821 = vld [vmem:[%s176 + $0xa0] sm:$0xf]
        %v822 = vld [vmem:[%s176 + $0xa4] sm:$0xf]
        %v823 = vld [vmem:[%s176 + $0xa8] sm:$0xf]
        %v824 = vld [vmem:[%s176 + $0xac] sm:$0xf]
        %v825 = vld [vmem:[%s176 + $0xb0] sm:$0xf]
        %v826 = vld [vmem:[%s176 + $0xb4] sm:$0xf]
        %v827 = vld [vmem:[%s176 + $0xb8] sm:$0xf]
        %v828 = vld [vmem:[%s176 + $0xbc] sm:$0xf]
        %v829 = vld [vmem:[%s176 + $0xc0] sm:$0xf]
        %v830 = vld [vmem:[%s176 + $0xc4] sm:$0xf]
        %v831 = vld [vmem:[%s176 + $0xc8] sm:$0xf]
        %v832 = vld [vmem:[%s176 + $0xcc] sm:$0xf]
        %v833 = vld [vmem:[%s176 + $0xd0] sm:$0xf]
        %v834 = vld [vmem:[%s176 + $0xd4] sm:$0xf]
        %v835 = vld [vmem:[%s176 + $0xd8] sm:$0xf]
        %v836 = vld [vmem:[%s176 + $0xdc] sm:$0xf]
        %v837 = vld [vmem:[%s176 + $0xe0] sm:$0xf]
        %v838 = vld [vmem:[%s176 + $0xe4] sm:$0xf]
        %v839 = vld [vmem:[%s176 + $0xe8] sm:$0xf]
        %v840 = vld [vmem:[%s176 + $0xec] sm:$0xf]
        %v841 = vld [vmem:[%s176 + $0xf0] sm:$0xf]
        %v842 = vld [vmem:[%s176 + $0xf4] sm:$0xf]
        %v843 = vld [vmem:[%s176 + $0xf8] sm:$0xf]
        %v844 = vld [vmem:[%s176 + $0xfc] sm:$0xf]
        %v845 = vld [vmem:[%s176 + $0x100] sm:$0xf]
        %v846 = vld [vmem:[%s176 + $0x104] sm:$0xf]
        %v847 = vld [vmem:[%s176 + $0x108] sm:$0xf]
        %v848 = vld [vmem:[%s176 + $0x10c] sm:$0xf]
        %v849 = vld [vmem:[%s176 + $0x110] sm:$0xf]
        %v850 = vld [vmem:[%s176 + $0x114] sm:$0xf]
        %v851 = vld [vmem:[%s176 + $0x118] sm:$0xf]
        %v852 = vld [vmem:[%s176 + $0x11c] sm:$0xf]
        %v853 = vld [vmem:[%s176 + $0x120] sm:$0xf]
        %v854 = vld [vmem:[%s176 + $0x124] sm:$0xf]
        %v855 = vld [vmem:[%s176 + $0x128] sm:$0xf]
        %v856 = vld [vmem:[%s176 + $0x12c] sm:$0xf]
        %v857 = vld [vmem:[%s176 + $0x130] sm:$0xf]
        %v858 = vld [vmem:[%s176 + $0x134] sm:$0xf]
        %v859 = vld [vmem:[%s176 + $0x138] sm:$0xf]
        %v860 = vld [vmem:[%s176 + $0x13c] sm:$0xf]
        %v861 = vld [vmem:[%s176 + $0x140] sm:$0xf]
        %v862 = vld [vmem:[%s176 + $0x144] sm:$0xf]
        %v863 = vld [vmem:[%s176 + $0x148] sm:$0xf]
        %v864 = vld [vmem:[%s176 + $0x14c] sm:$0xf]
        %v865 = vld [vmem:[%s176 + $0x150] sm:$0xf]
        %v866 = vld [vmem:[%s176 + $0x154] sm:$0xf]
        %v867 = vld [vmem:[%s176 + $0x158] sm:$0xf]
        %v868 = vld [vmem:[%s176 + $0x15c] sm:$0xf]
        %v869 = vld [vmem:[%s176 + $0x160] sm:$0xf]
        %v870 = vld [vmem:[%s176 + $0x164] sm:$0xf]
        %v871 = vld [vmem:[%s176 + $0x168] sm:$0xf]
        %v872 = vld [vmem:[%s176 + $0x16c] sm:$0xf]
        %v873 = vld [vmem:[%s176 + $0x170] sm:$0xf]
        %v874 = vld [vmem:[%s176 + $0x174] sm:$0xf]
        %v875 = vld [vmem:[%s176 + $0x178] sm:$0xf]
        %v876 = vld [vmem:[%s176 + $0x17c] sm:$0xf]
        %v877 = vld [vmem:[%s176 + $0x180] sm:$0xf]
        %v878 = vld [vmem:[%s176 + $0x184] sm:$0xf]
        %v879 = vld [vmem:[%s176 + $0x188] sm:$0xf]
        %v880 = vld [vmem:[%s176 + $0x18c] sm:$0xf]
        %v881 = vld [vmem:[%s176 + $0x190] sm:$0xf]
        %v882 = vld [vmem:[%s176 + $0x194] sm:$0xf]
        %v883 = vld [vmem:[%s176 + $0x198] sm:$0xf]
        %v884 = vld [vmem:[%s176 + $0x19c] sm:$0xf]
        %v885 = vld [vmem:[%s176 + $0x1a0] sm:$0xf]
        %v886 = vld [vmem:[%s176 + $0x1a4] sm:$0xf]
        %v887 = vld [vmem:[%s176 + $0x1a8] sm:$0xf]
        %v888 = vld [vmem:[%s176 + $0x1ac] sm:$0xf]
        %v889 = vld [vmem:[%s176 + $0x1b0] sm:$0xf]
        %v890 = vld [vmem:[%s176 + $0x1b4] sm:$0xf]
        %v891 = vld [vmem:[%s176 + $0x1b8] sm:$0xf]
        %v892 = vld [vmem:[%s176 + $0x1bc] sm:$0xf]
        %v893 = vld [vmem:[%s176 + $0x1c0] sm:$0xf]
        %v894 = vld [vmem:[%s176 + $0x1c4] sm:$0xf]
        %v895 = vld [vmem:[%s176 + $0x1c8] sm:$0xf]
        %v896 = vld [vmem:[%s176 + $0x1cc] sm:$0xf]
        %v897 = vld [vmem:[%s176 + $0x1d0] sm:$0xf]
        %v898 = vld [vmem:[%s176 + $0x1d4] sm:$0xf]
        %v899 = vld [vmem:[%s176 + $0x1d8] sm:$0xf]
        %v900 = vld [vmem:[%s176 + $0x1dc] sm:$0xf]
        %v901 = vld [vmem:[%s176 + $0x1e0] sm:$0xf]
        %v902 = vld [vmem:[%s176 + $0x1e4] sm:$0xf]
        %v903 = vld [vmem:[%s176 + $0x1e8] sm:$0xf]
        %v904 = vld [vmem:[%s176 + $0x1ec] sm:$0xf]
        %v905 = vld [vmem:[%s176 + $0x1f0] sm:$0xf]
        %v906 = vld [vmem:[%s176 + $0x1f4] sm:$0xf]
        %v907 = vld [vmem:[%s176 + $0x1f8] sm:$0xf]
        %v908 = vld [vmem:[%s176 + $0x1fc] sm:$0xf]
        %v909 = vld [vmem:[%s176 + $0x200] sm:$0xf]
        %v910 = vld [vmem:[%s176 + $0x204] sm:$0xf]
        %v911 = vld [vmem:[%s176 + $0x208] sm:$0xf]
        %v912 = vld [vmem:[%s176 + $0x20c] sm:$0xf]
        %v913 = vld [vmem:[%s176 + $0x210] sm:$0xf]
        %v914 = vld [vmem:[%s176 + $0x214] sm:$0xf]
        %v915 = vld [vmem:[%s176 + $0x218] sm:$0xf]
        %v916 = vld [vmem:[%s176 + $0x21c] sm:$0xf]
        %v917 = vld [vmem:[%s176 + $0x220] sm:$0xf]
        %v918 = vld [vmem:[%s176 + $0x224] sm:$0xf]
        %v919 = vld [vmem:[%s176 + $0x228] sm:$0xf]
        %v920 = vld [vmem:[%s176 + $0x22c] sm:$0xf]
        %v921 = vld [vmem:[%s176 + $0x230] sm:$0xf]
        %v922 = vld [vmem:[%s176 + $0x234] sm:$0xf]
        %v923 = vld [vmem:[%s176 + $0x238] sm:$0xf]
        %v924 = vld [vmem:[%s176 + $0x23c] sm:$0xf]
        %v925 = vld [vmem:[%s176 + $0x240] sm:$0xf]
        %v926 = vld [vmem:[%s176 + $0x244] sm:$0xf]
        %v927 = vld [vmem:[%s176 + $0x248] sm:$0xf]
        %v928 = vld [vmem:[%s176 + $0x24c] sm:$0xf]
        %v929 = vld [vmem:[%s176 + $0x250] sm:$0xf]
        %v930 = vld [vmem:[%s176 + $0x254] sm:$0xf]
        %v931 = vld [vmem:[%s176 + $0x258] sm:$0xf]
        %v932 = vld [vmem:[%s176 + $0x25c] sm:$0xf]
        %v933 = vld [vmem:[%s176 + $0x260] sm:$0xf]
        %v934 = vld [vmem:[%s176 + $0x264] sm:$0xf]
        %v935 = vld [vmem:[%s176 + $0x268] sm:$0xf]
        %v936 = vld [vmem:[%s176 + $0x26c] sm:$0xf]
        %v937 = vld [vmem:[%s176 + $0x270] sm:$0xf]
        %v938 = vld [vmem:[%s176 + $0x274] sm:$0xf]
        %v939 = vld [vmem:[%s176 + $0x278] sm:$0xf]
        %v940 = vld [vmem:[%s176 + $0x27c] sm:$0xf]
        %v941 = vld [vmem:[%s176 + $0x280] sm:$0xf]
        %v942 = vld [vmem:[%s176 + $0x284] sm:$0xf]
        %v943 = vld [vmem:[%s176 + $0x288] sm:$0xf]
        %v944 = vld [vmem:[%s176 + $0x28c] sm:$0xf]
        %v945 = vld [vmem:[%s176 + $0x290] sm:$0xf]
        %v946 = vld [vmem:[%s176 + $0x294] sm:$0xf]
        %v947 = vld [vmem:[%s176 + $0x298] sm:$0xf]
        %v948 = vld [vmem:[%s176 + $0x29c] sm:$0xf]
        %v949 = vld [vmem:[%s176 + $0x2a0] sm:$0xf]
        %v950 = vld [vmem:[%s176 + $0x2a4] sm:$0xf]
        %v951 = vld [vmem:[%s176 + $0x2a8] sm:$0xf]
        %v952 = vld [vmem:[%s176 + $0x2ac] sm:$0xf]
        %v953 = vld [vmem:[%s176 + $0x2b0] sm:$0xf]
        %v954 = vld [vmem:[%s176 + $0x2b4] sm:$0xf]
        %v955 = vld [vmem:[%s176 + $0x2b8] sm:$0xf]
        %v956 = vld [vmem:[%s176 + $0x2bc] sm:$0xf]
        %v957 = vld [vmem:[%s176 + $0x2c0] sm:$0xf]
        %v958 = vld [vmem:[%s176 + $0x2c4] sm:$0xf]
        %v959 = vld [vmem:[%s176 + $0x2c8] sm:$0xf]
        %v960 = vld [vmem:[%s176 + $0x2cc] sm:$0xf]
        %v961 = vld [vmem:[%s176 + $0x2d0] sm:$0xf]
        %v962 = vld [vmem:[%s176 + $0x2d4] sm:$0xf]
        %v963 = vld [vmem:[%s176 + $0x2d8] sm:$0xf]
        %v964 = vld [vmem:[%s176 + $0x2dc] sm:$0xf]
        %v965 = vld [vmem:[%s176 + $0x2e0] sm:$0xf]
        %v966 = vld [vmem:[%s176 + $0x2e4] sm:$0xf]
        %v967 = vld [vmem:[%s176 + $0x2e8] sm:$0xf]
        %v968 = vld [vmem:[%s176 + $0x2ec] sm:$0xf]
        %v969 = vld [vmem:[%s176 + $0x2f0] sm:$0xf]
        %v970 = vld [vmem:[%s176 + $0x2f4] sm:$0xf]
        %v971 = vld [vmem:[%s176 + $0x2f8] sm:$0xf]
        %v972 = vld [vmem:[%s176 + $0x2fc] sm:$0xf]
        %v973 = vld [vmem:[%s176 + $0x300] sm:$0xf]
        %v974 = vld [vmem:[%s176 + $0x304] sm:$0xf]
        %v975 = vld [vmem:[%s176 + $0x308] sm:$0xf]
        %v976 = vld [vmem:[%s176 + $0x30c] sm:$0xf]
        %v977 = vld [vmem:[%s176 + $0x310] sm:$0xf]
        %v978 = vld [vmem:[%s176 + $0x314] sm:$0xf]
        %v979 = vld [vmem:[%s176 + $0x318] sm:$0xf]
        %v980 = vld [vmem:[%s176 + $0x31c] sm:$0xf]
        %v981 = vld [vmem:[%s176 + $0x320] sm:$0xf]
        %v982 = vld [vmem:[%s176 + $0x324] sm:$0xf]
        %v983 = vld [vmem:[%s176 + $0x328] sm:$0xf]
        %v984 = vld [vmem:[%s176 + $0x32c] sm:$0xf]
        %v985 = vld [vmem:[%s176 + $0x330] sm:$0xf]
        %v986 = vld [vmem:[%s176 + $0x334] sm:$0xf]
        %v987 = vld [vmem:[%s176 + $0x338] sm:$0xf]
        %v988 = vld [vmem:[%s176 + $0x33c] sm:$0xf]
        %v989 = vld [vmem:[%s176 + $0x340] sm:$0xf]
        %v990 = vld [vmem:[%s176 + $0x344] sm:$0xf]
        %v991 = vld [vmem:[%s176 + $0x348] sm:$0xf]
        %v992 = vld [vmem:[%s176 + $0x34c] sm:$0xf]
        %v993 = vld [vmem:[%s176 + $0x350] sm:$0xf]
        %v994 = vld [vmem:[%s176 + $0x354] sm:$0xf]
        %v995 = vld [vmem:[%s176 + $0x358] sm:$0xf]
        %v996 = vld [vmem:[%s176 + $0x35c] sm:$0xf]
        %v997 = vld [vmem:[%s176 + $0x360] sm:$0xf]
        %v998 = vld [vmem:[%s176 + $0x364] sm:$0xf]
        %v999 = vld [vmem:[%s176 + $0x368] sm:$0xf]
        %v1000 = vld [vmem:[%s176 + $0x36c] sm:$0xf]
        %v1001 = vld [vmem:[%s176 + $0x370] sm:$0xf]
        %v1002 = vld [vmem:[%s176 + $0x374] sm:$0xf]
        %v1003 = vld [vmem:[%s176 + $0x378] sm:$0xf]
        %v1004 = vld [vmem:[%s176 + $0x37c] sm:$0xf]
        %v1005 = vld [vmem:[%s176 + $0x380] sm:$0xf]
        %v1006 = vld [vmem:[%s176 + $0x384] sm:$0xf]
        %v1007 = vld [vmem:[%s176 + $0x388] sm:$0xf]
        %v1008 = vld [vmem:[%s176 + $0x38c] sm:$0xf]
        %v1009 = vld [vmem:[%s176 + $0x390] sm:$0xf]
        %v1010 = vld [vmem:[%s176 + $0x394] sm:$0xf]
        %v1011 = vld [vmem:[%s176 + $0x398] sm:$0xf]
        %v1012 = vld [vmem:[%s176 + $0x39c] sm:$0xf]
        %v1013 = vld [vmem:[%s176 + $0x3a0] sm:$0xf]
        %v1014 = vld [vmem:[%s176 + $0x3a4] sm:$0xf]
        %v1015 = vld [vmem:[%s176 + $0x3a8] sm:$0xf]
        %v1016 = vld [vmem:[%s176 + $0x3ac] sm:$0xf]
        %v1017 = vld [vmem:[%s176 + $0x3b0] sm:$0xf]
        %v1018 = vld [vmem:[%s176 + $0x3b4] sm:$0xf]
        %v1019 = vld [vmem:[%s176 + $0x3b8] sm:$0xf]
        %v1020 = vld [vmem:[%s176 + $0x3bc] sm:$0xf]
        %v1021 = vld [vmem:[%s176 + $0x3c0] sm:$0xf]
        %v1022 = vld [vmem:[%s176 + $0x3c4] sm:$0xf]
        %v1023 = vld [vmem:[%s176 + $0x3c8] sm:$0xf]
        %v1024 = vld [vmem:[%s176 + $0x3cc] sm:$0xf]
        %v1025 = vld [vmem:[%s176 + $0x3d0] sm:$0xf]
        %v1026 = vld [vmem:[%s176 + $0x3d4] sm:$0xf]
        %v1027 = vld [vmem:[%s176 + $0x3d8] sm:$0xf]
        %v1028 = vld [vmem:[%s176 + $0x3dc] sm:$0xf]
        %v1029 = vld [vmem:[%s176 + $0x3e0] sm:$0xf]
        %v1030 = vld [vmem:[%s176 + $0x3e4] sm:$0xf]
        %v1031 = vld [vmem:[%s176 + $0x3e8] sm:$0xf]
        %v1032 = vld [vmem:[%s176 + $0x3ec] sm:$0xf]
        %v1033 = vld [vmem:[%s176 + $0x3f0] sm:$0xf]
        %v1034 = vld [vmem:[%s176 + $0x3f4] sm:$0xf]
        %v1035 = vld [vmem:[%s176 + $0x3f8] sm:$0xf]
        %v1036 = vld [vmem:[%s176 + $0x3fc] sm:$0xf]
        %v1037 = vld [vmem:[%s176 + $0x400] sm:$0xf]
        %v1038 = vld [vmem:[%s176 + $0x404] sm:$0xf]
        %v1039 = vld [vmem:[%s176 + $0x408] sm:$0xf]
        %v1040 = vld [vmem:[%s176 + $0x40c] sm:$0xf]
        %v1041 = vld [vmem:[%s176 + $0x410] sm:$0xf]
        %v1042 = vld [vmem:[%s176 + $0x414] sm:$0xf]
        %v1043 = vld [vmem:[%s176 + $0x418] sm:$0xf]
        %v1044 = vld [vmem:[%s176 + $0x41c] sm:$0xf]
        %v1045 = vld [vmem:[%s176 + $0x420] sm:$0xf]
        %v1046 = vld [vmem:[%s176 + $0x424] sm:$0xf]
        %v1047 = vld [vmem:[%s176 + $0x428] sm:$0xf]
        %v1048 = vld [vmem:[%s176 + $0x42c] sm:$0xf]
        %v1049 = vld [vmem:[%s176 + $0x430] sm:$0xf]
        %v1050 = vld [vmem:[%s176 + $0x434] sm:$0xf]
        %v1051 = vld [vmem:[%s176 + $0x438] sm:$0xf]
        %v1052 = vld [vmem:[%s176 + $0x43c] sm:$0xf]
        %v1053 = vld [vmem:[%s176 + $0x440] sm:$0xf]
        %v1054 = vld [vmem:[%s176 + $0x444] sm:$0xf]
        %v1055 = vld [vmem:[%s176 + $0x448] sm:$0xf]
        %v1056 = vld [vmem:[%s176 + $0x44c] sm:$0xf]
        %v1057 = vld [vmem:[%s176 + $0x450] sm:$0xf]
        %v1058 = vld [vmem:[%s176 + $0x454] sm:$0xf]
        %v1059 = vld [vmem:[%s176 + $0x458] sm:$0xf]
        %v1060 = vld [vmem:[%s176 + $0x45c] sm:$0xf]
        %v1061 = vld [vmem:[%s176 + $0x460] sm:$0xf]
        %v1062 = vld [vmem:[%s176 + $0x464] sm:$0xf]
        %v1063 = vld [vmem:[%s176 + $0x468] sm:$0xf]
        %v1064 = vld [vmem:[%s176 + $0x46c] sm:$0xf]
        %v1065 = vld [vmem:[%s176 + $0x470] sm:$0xf]
        %v1066 = vld [vmem:[%s176 + $0x474] sm:$0xf]
        %v1067 = vld [vmem:[%s176 + $0x478] sm:$0xf]
        %v1068 = vld [vmem:[%s176 + $0x47c] sm:$0xf]
        %v1069 = vunpack.c.l.bf16 %v781
        %v1070 = vunpack.c.l.bf16 %v782
        %v1071 = vunpack.c.l.bf16 %v783
        %v1072 = vunpack.c.l.bf16 %v784
        %v1073 = vunpack.c.l.bf16 %v785
        %v1074 = vunpack.c.l.bf16 %v786
        %v1075 = vunpack.c.l.bf16 %v787
        %v1076 = vunpack.c.l.bf16 %v788
        %v1077 = vunpack.c.l.bf16 %v789
        %v1078 = vunpack.c.l.bf16 %v790
        %v1079 = vunpack.c.l.bf16 %v791
        %v1080 = vunpack.c.l.bf16 %v792
        %v1081 = vunpack.c.l.bf16 %v793
        %v1082 = vunpack.c.l.bf16 %v794
        %v1083 = vunpack.c.l.bf16 %v795
        %v1084 = vunpack.c.l.bf16 %v796
        %v1085 = vunpack.c.l.bf16 %v797
        %v1086 = vunpack.c.l.bf16 %v798
        %v1087 = vunpack.c.l.bf16 %v799
        %v1088 = vunpack.c.l.bf16 %v800
        %v1089 = vunpack.c.l.bf16 %v801
        %v1090 = vunpack.c.l.bf16 %v802
        %v1091 = vunpack.c.l.bf16 %v803
        %v1092 = vunpack.c.l.bf16 %v804
        %v1093 = vunpack.c.l.bf16 %v805
        %v1094 = vunpack.c.l.bf16 %v806
        %v1095 = vunpack.c.l.bf16 %v807
        %v1096 = vunpack.c.l.bf16 %v808
        %v1097 = vunpack.c.l.bf16 %v809
        %v1098 = vunpack.c.l.bf16 %v810
        %v1099 = vunpack.c.l.bf16 %v811
        %v1100 = vunpack.c.l.bf16 %v812
        %v1101 = vunpack.c.l.bf16 %v813
        %v1102 = vunpack.c.l.bf16 %v814
        %v1103 = vunpack.c.l.bf16 %v815
        %v1104 = vunpack.c.l.bf16 %v816
        %v1105 = vunpack.c.l.bf16 %v817
        %v1106 = vunpack.c.l.bf16 %v818
        %v1107 = vunpack.c.l.bf16 %v819
        %v1108 = vunpack.c.l.bf16 %v820
        %v1109 = vunpack.c.l.bf16 %v821
        %v1110 = vunpack.c.l.bf16 %v822
        %v1111 = vunpack.c.l.bf16 %v823
        %v1112 = vunpack.c.l.bf16 %v824
        %v1113 = vunpack.c.l.bf16 %v825
        %v1114 = vunpack.c.l.bf16 %v826
        %v1115 = vunpack.c.l.bf16 %v827
        %v1116 = vunpack.c.l.bf16 %v828
        %v1117 = vunpack.c.l.bf16 %v829
        %v1118 = vunpack.c.l.bf16 %v830
        %v1119 = vunpack.c.l.bf16 %v831
        %v1120 = vunpack.c.l.bf16 %v832
        %v1121 = vunpack.c.l.bf16 %v833
        %v1122 = vunpack.c.l.bf16 %v834
        %v1123 = vunpack.c.l.bf16 %v835
        %v1124 = vunpack.c.l.bf16 %v836
        %v1125 = vunpack.c.l.bf16 %v837
        %v1126 = vunpack.c.l.bf16 %v838
        %v1127 = vunpack.c.l.bf16 %v839
        %v1128 = vunpack.c.l.bf16 %v840
        %v1129 = vunpack.c.l.bf16 %v841
        %v1130 = vunpack.c.l.bf16 %v842
        %v1131 = vunpack.c.l.bf16 %v843
        %v1132 = vunpack.c.l.bf16 %v844
        %v1133 = vunpack.c.l.bf16 %v845
        %v1134 = vunpack.c.l.bf16 %v846
        %v1135 = vunpack.c.l.bf16 %v847
        %v1136 = vunpack.c.l.bf16 %v848
        %v1137 = vunpack.c.l.bf16 %v849
        %v1138 = vunpack.c.l.bf16 %v850
        %v1139 = vunpack.c.l.bf16 %v851
        %v1140 = vunpack.c.l.bf16 %v852
        %v1141 = vunpack.c.l.bf16 %v853
        %v1142 = vunpack.c.l.bf16 %v854
        %v1143 = vunpack.c.l.bf16 %v855
        %v1144 = vunpack.c.l.bf16 %v856
        %v1145 = vunpack.c.l.bf16 %v857
        %v1146 = vunpack.c.l.bf16 %v858
        %v1147 = vunpack.c.l.bf16 %v859
        %v1148 = vunpack.c.l.bf16 %v860
        %v1149 = vunpack.c.l.bf16 %v861
        %v1150 = vunpack.c.l.bf16 %v862
        %v1151 = vunpack.c.l.bf16 %v863
        %v1152 = vunpack.c.l.bf16 %v864
        %v1153 = vunpack.c.l.bf16 %v865
        %v1154 = vunpack.c.l.bf16 %v866
        %v1155 = vunpack.c.l.bf16 %v867
        %v1156 = vunpack.c.l.bf16 %v868
        %v1157 = vunpack.c.l.bf16 %v869
        %v1158 = vunpack.c.l.bf16 %v870
        %v1159 = vunpack.c.l.bf16 %v871
        %v1160 = vunpack.c.l.bf16 %v872
        %v1161 = vunpack.c.l.bf16 %v873
        %v1162 = vunpack.c.l.bf16 %v874
        %v1163 = vunpack.c.l.bf16 %v875
        %v1164 = vunpack.c.l.bf16 %v876
        %v1165 = vunpack.c.l.bf16 %v877
        %v1166 = vunpack.c.l.bf16 %v878
        %v1167 = vunpack.c.l.bf16 %v879
        %v1168 = vunpack.c.l.bf16 %v880
        %v1169 = vunpack.c.l.bf16 %v881
        %v1170 = vunpack.c.l.bf16 %v882
        %v1171 = vunpack.c.l.bf16 %v883
        %v1172 = vunpack.c.l.bf16 %v884
        %v1173 = vunpack.c.l.bf16 %v885
        %v1174 = vunpack.c.l.bf16 %v886
        %v1175 = vunpack.c.l.bf16 %v887
        %v1176 = vunpack.c.l.bf16 %v888
        %v1177 = vunpack.c.l.bf16 %v889
        %v1178 = vunpack.c.l.bf16 %v890
        %v1179 = vunpack.c.l.bf16 %v891
        %v1180 = vunpack.c.l.bf16 %v892
        %v1181 = vunpack.c.l.bf16 %v893
        %v1182 = vunpack.c.l.bf16 %v894
        %v1183 = vunpack.c.l.bf16 %v895
        %v1184 = vunpack.c.l.bf16 %v896
        %v1185 = vunpack.c.l.bf16 %v897
        %v1186 = vunpack.c.l.bf16 %v898
        %v1187 = vunpack.c.l.bf16 %v899
        %v1188 = vunpack.c.l.bf16 %v900
        %v1189 = vunpack.c.l.bf16 %v901
        %v1190 = vunpack.c.l.bf16 %v902
        %v1191 = vunpack.c.l.bf16 %v903
        %v1192 = vunpack.c.l.bf16 %v904
        %v1193 = vunpack.c.l.bf16 %v905
        %v1194 = vunpack.c.l.bf16 %v906
        %v1195 = vunpack.c.l.bf16 %v907
        %v1196 = vunpack.c.l.bf16 %v908
        %v1197 = vunpack.c.l.bf16 %v909
        %v1198 = vunpack.c.l.bf16 %v910
        %v1199 = vunpack.c.l.bf16 %v911
        %v1200 = vunpack.c.l.bf16 %v912
        %v1201 = vunpack.c.l.bf16 %v913
        %v1202 = vunpack.c.l.bf16 %v914
        %v1203 = vunpack.c.l.bf16 %v915
        %v1204 = vunpack.c.l.bf16 %v916
        %v1205 = vunpack.c.l.bf16 %v917
        %v1206 = vunpack.c.l.bf16 %v918
        %v1207 = vunpack.c.l.bf16 %v919
        %v1208 = vunpack.c.l.bf16 %v920
        %v1209 = vunpack.c.l.bf16 %v921
        %v1210 = vunpack.c.l.bf16 %v922
        %v1211 = vunpack.c.l.bf16 %v923
        %v1212 = vunpack.c.l.bf16 %v924
        %v1213 = vunpack.c.l.bf16 %v925
        %v1214 = vunpack.c.l.bf16 %v926
        %v1215 = vunpack.c.l.bf16 %v927
        %v1216 = vunpack.c.l.bf16 %v928
        %v1217 = vunpack.c.l.bf16 %v929
        %v1218 = vunpack.c.l.bf16 %v930
        %v1219 = vunpack.c.l.bf16 %v931
        %v1220 = vunpack.c.l.bf16 %v932
        %v1221 = vunpack.c.l.bf16 %v933
        %v1222 = vunpack.c.l.bf16 %v934
        %v1223 = vunpack.c.l.bf16 %v935
        %v1224 = vunpack.c.l.bf16 %v936
        %v1225 = vunpack.c.l.bf16 %v937
        %v1226 = vunpack.c.l.bf16 %v938
        %v1227 = vunpack.c.l.bf16 %v939
        %v1228 = vunpack.c.l.bf16 %v940
        %v1229 = vunpack.c.l.bf16 %v941
        %v1230 = vunpack.c.l.bf16 %v942
        %v1231 = vunpack.c.l.bf16 %v943
        %v1232 = vunpack.c.l.bf16 %v944
        %v1233 = vunpack.c.l.bf16 %v945
        %v1234 = vunpack.c.l.bf16 %v946
        %v1235 = vunpack.c.l.bf16 %v947
        %v1236 = vunpack.c.l.bf16 %v948
        %v1237 = vunpack.c.l.bf16 %v949
        %v1238 = vunpack.c.l.bf16 %v950
        %v1239 = vunpack.c.l.bf16 %v951
        %v1240 = vunpack.c.l.bf16 %v952
        %v1241 = vunpack.c.l.bf16 %v953
        %v1242 = vunpack.c.l.bf16 %v954
        %v1243 = vunpack.c.l.bf16 %v955
        %v1244 = vunpack.c.l.bf16 %v956
        %v1245 = vunpack.c.l.bf16 %v957
        %v1246 = vunpack.c.l.bf16 %v958
        %v1247 = vunpack.c.l.bf16 %v959
        %v1248 = vunpack.c.l.bf16 %v960
        %v1249 = vunpack.c.l.bf16 %v961
        %v1250 = vunpack.c.l.bf16 %v962
        %v1251 = vunpack.c.l.bf16 %v963
        %v1252 = vunpack.c.l.bf16 %v964
        %v1253 = vunpack.c.l.bf16 %v965
        %v1254 = vunpack.c.l.bf16 %v966
        %v1255 = vunpack.c.l.bf16 %v967
        %v1256 = vunpack.c.l.bf16 %v968
        %v1257 = vunpack.c.l.bf16 %v969
        %v1258 = vunpack.c.l.bf16 %v970
        %v1259 = vunpack.c.l.bf16 %v971
        %v1260 = vunpack.c.l.bf16 %v972
        %v1261 = vunpack.c.l.bf16 %v973
        %v1262 = vunpack.c.l.bf16 %v974
        %v1263 = vunpack.c.l.bf16 %v975
        %v1264 = vunpack.c.l.bf16 %v976
        %v1265 = vunpack.c.l.bf16 %v977
        %v1266 = vunpack.c.l.bf16 %v978
        %v1267 = vunpack.c.l.bf16 %v979
        %v1268 = vunpack.c.l.bf16 %v980
        %v1269 = vunpack.c.l.bf16 %v981
        %v1270 = vunpack.c.l.bf16 %v982
        %v1271 = vunpack.c.l.bf16 %v983
        %v1272 = vunpack.c.l.bf16 %v984
        %v1273 = vunpack.c.l.bf16 %v985
        %v1274 = vunpack.c.l.bf16 %v986
        %v1275 = vunpack.c.l.bf16 %v987
        %v1276 = vunpack.c.l.bf16 %v988
        %v1277 = vunpack.c.l.bf16 %v989
        %v1278 = vunpack.c.l.bf16 %v990
        %v1279 = vunpack.c.l.bf16 %v991
        %v1280 = vunpack.c.l.bf16 %v992
        %v1281 = vunpack.c.l.bf16 %v993
        %v1282 = vunpack.c.l.bf16 %v994
        %v1283 = vunpack.c.l.bf16 %v995
        %v1284 = vunpack.c.l.bf16 %v996
        %v1285 = vunpack.c.l.bf16 %v997
        %v1286 = vunpack.c.l.bf16 %v998
        %v1287 = vunpack.c.l.bf16 %v999
        %v1288 = vunpack.c.l.bf16 %v1000
        %v1289 = vunpack.c.l.bf16 %v1001
        %v1290 = vunpack.c.l.bf16 %v1002
        %v1291 = vunpack.c.l.bf16 %v1003
        %v1292 = vunpack.c.l.bf16 %v1004
        %v1293 = vunpack.c.l.bf16 %v1005
        %v1294 = vunpack.c.l.bf16 %v1006
        %v1295 = vunpack.c.l.bf16 %v1007
        %v1296 = vunpack.c.l.bf16 %v1008
        %v1297 = vunpack.c.l.bf16 %v1009
        %v1298 = vunpack.c.l.bf16 %v1010
        %v1299 = vunpack.c.l.bf16 %v1011
        %v1300 = vunpack.c.l.bf16 %v1012
        %v1301 = vunpack.c.l.bf16 %v1013
        %v1302 = vunpack.c.l.bf16 %v1014
        %v1303 = vunpack.c.l.bf16 %v1015
        %v1304 = vunpack.c.l.bf16 %v1016
        %v1305 = vunpack.c.l.bf16 %v1017
        %v1306 = vunpack.c.l.bf16 %v1018
        %v1307 = vunpack.c.l.bf16 %v1019
        %v1308 = vunpack.c.l.bf16 %v1020
        %v1309 = vunpack.c.l.bf16 %v1021
        %v1310 = vunpack.c.l.bf16 %v1022
        %v1311 = vunpack.c.l.bf16 %v1023
        %v1312 = vunpack.c.l.bf16 %v1024
        %v1313 = vunpack.c.l.bf16 %v1025
        %v1314 = vunpack.c.l.bf16 %v1026
        %v1315 = vunpack.c.l.bf16 %v1027
        %v1316 = vunpack.c.l.bf16 %v1028
        %v1317 = vunpack.c.l.bf16 %v1029
        %v1318 = vunpack.c.l.bf16 %v1030
        %v1319 = vunpack.c.l.bf16 %v1031
        %v1320 = vunpack.c.l.bf16 %v1032
        %v1321 = vunpack.c.l.bf16 %v1033
        %v1322 = vunpack.c.l.bf16 %v1034
        %v1323 = vunpack.c.l.bf16 %v1035
        %v1324 = vunpack.c.l.bf16 %v1036
        %v1325 = vunpack.c.l.bf16 %v1037
        %v1326 = vunpack.c.l.bf16 %v1038
        %v1327 = vunpack.c.l.bf16 %v1039
        %v1328 = vunpack.c.l.bf16 %v1040
        %v1329 = vunpack.c.l.bf16 %v1041
        %v1330 = vunpack.c.l.bf16 %v1042
        %v1331 = vunpack.c.l.bf16 %v1043
        %v1332 = vunpack.c.l.bf16 %v1044
        %v1333 = vunpack.c.l.bf16 %v1045
        %v1334 = vunpack.c.l.bf16 %v1046
        %v1335 = vunpack.c.l.bf16 %v1047
        %v1336 = vunpack.c.l.bf16 %v1048
        %v1337 = vunpack.c.l.bf16 %v1049
        %v1338 = vunpack.c.l.bf16 %v1050
        %v1339 = vunpack.c.l.bf16 %v1051
        %v1340 = vunpack.c.l.bf16 %v1052
        %v1341 = vunpack.c.l.bf16 %v1053
        %v1342 = vunpack.c.l.bf16 %v1054
        %v1343 = vunpack.c.l.bf16 %v1055
        %v1344 = vunpack.c.l.bf16 %v1056
        %v1345 = vunpack.c.l.bf16 %v1057
        %v1346 = vunpack.c.l.bf16 %v1058
        %v1347 = vunpack.c.l.bf16 %v1059
        %v1348 = vunpack.c.l.bf16 %v1060
        %v1349 = vunpack.c.l.bf16 %v1061
        %v1350 = vunpack.c.l.bf16 %v1062
        %v1351 = vunpack.c.l.bf16 %v1063
        %v1352 = vunpack.c.l.bf16 %v1064
        %v1353 = vunpack.c.l.bf16 %v1065
        %v1354 = vunpack.c.l.bf16 %v1066
        %v1355 = vunpack.c.l.bf16 %v1067
        %v1356 = vunpack.c.l.bf16 %v1068
        %v1357 = vadd.f32 %v493, %v1069
        %v1358 = vadd.f32 %v494, %v1070
        %v1359 = vadd.f32 %v495, %v1071
        %v1360 = vadd.f32 %v496, %v1072
        %v1361 = vadd.f32 %v497, %v1073
        %v1362 = vadd.f32 %v498, %v1074
        %v1363 = vadd.f32 %v499, %v1075
        %v1364 = vadd.f32 %v500, %v1076
        %v1365 = vadd.f32 %v501, %v1077
        %v1366 = vadd.f32 %v502, %v1078
        %v1367 = vadd.f32 %v503, %v1079
        %v1368 = vadd.f32 %v504, %v1080
        %v1369 = vadd.f32 %v505, %v1081
        %v1370 = vadd.f32 %v506, %v1082
        %v1371 = vadd.f32 %v507, %v1083
        %v1372 = vadd.f32 %v508, %v1084
        %v1373 = vadd.f32 %v509, %v1085
        %v1374 = vadd.f32 %v510, %v1086
        %v1375 = vadd.f32 %v511, %v1087
        %v1376 = vadd.f32 %v512, %v1088
        %v1377 = vadd.f32 %v513, %v1089
        %v1378 = vadd.f32 %v514, %v1090
        %v1379 = vadd.f32 %v515, %v1091
        %v1380 = vadd.f32 %v516, %v1092
        %v1381 = vadd.f32 %v517, %v1093
        %v1382 = vadd.f32 %v518, %v1094
        %v1383 = vadd.f32 %v519, %v1095
        %v1384 = vadd.f32 %v520, %v1096
        %v1385 = vadd.f32 %v521, %v1097
        %v1386 = vadd.f32 %v522, %v1098
        %v1387 = vadd.f32 %v523, %v1099
        %v1388 = vadd.f32 %v524, %v1100
        %v1389 = vadd.f32 %v525, %v1101
        %v1390 = vadd.f32 %v526, %v1102
        %v1391 = vadd.f32 %v527, %v1103
        %v1392 = vadd.f32 %v528, %v1104
        %v1393 = vadd.f32 %v529, %v1105
        %v1394 = vadd.f32 %v530, %v1106
        %v1395 = vadd.f32 %v531, %v1107
        %v1396 = vadd.f32 %v532, %v1108
        %v1397 = vadd.f32 %v533, %v1109
        %v1398 = vadd.f32 %v534, %v1110
        %v1399 = vadd.f32 %v535, %v1111
        %v1400 = vadd.f32 %v536, %v1112
        %v1401 = vadd.f32 %v537, %v1113
        %v1402 = vadd.f32 %v538, %v1114
        %v1403 = vadd.f32 %v539, %v1115
        %v1404 = vadd.f32 %v540, %v1116
        %v1405 = vadd.f32 %v541, %v1117
        %v1406 = vadd.f32 %v542, %v1118
        %v1407 = vadd.f32 %v543, %v1119
        %v1408 = vadd.f32 %v544, %v1120
        %v1409 = vadd.f32 %v545, %v1121
        %v1410 = vadd.f32 %v546, %v1122
        %v1411 = vadd.f32 %v547, %v1123
        %v1412 = vadd.f32 %v548, %v1124
        %v1413 = vadd.f32 %v549, %v1125
        %v1414 = vadd.f32 %v550, %v1126
        %v1415 = vadd.f32 %v551, %v1127
        %v1416 = vadd.f32 %v552, %v1128
        %v1417 = vadd.f32 %v553, %v1129
        %v1418 = vadd.f32 %v554, %v1130
        %v1419 = vadd.f32 %v555, %v1131
        %v1420 = vadd.f32 %v556, %v1132
        %v1421 = vadd.f32 %v557, %v1133
        %v1422 = vadd.f32 %v558, %v1134
        %v1423 = vadd.f32 %v559, %v1135
        %v1424 = vadd.f32 %v560, %v1136
        %v1425 = vadd.f32 %v561, %v1137
        %v1426 = vadd.f32 %v562, %v1138
        %v1427 = vadd.f32 %v563, %v1139
        %v1428 = vadd.f32 %v564, %v1140
        %v1429 = vadd.f32 %v565, %v1141
        %v1430 = vadd.f32 %v566, %v1142
        %v1431 = vadd.f32 %v567, %v1143
        %v1432 = vadd.f32 %v568, %v1144
        %v1433 = vadd.f32 %v569, %v1145
        %v1434 = vadd.f32 %v570, %v1146
        %v1435 = vadd.f32 %v571, %v1147
        %v1436 = vadd.f32 %v572, %v1148
        %v1437 = vadd.f32 %v573, %v1149
        %v1438 = vadd.f32 %v574, %v1150
        %v1439 = vadd.f32 %v575, %v1151
        %v1440 = vadd.f32 %v576, %v1152
        %v1441 = vadd.f32 %v577, %v1153
        %v1442 = vadd.f32 %v578, %v1154
        %v1443 = vadd.f32 %v579, %v1155
        %v1444 = vadd.f32 %v580, %v1156
        %v1445 = vadd.f32 %v581, %v1157
        %v1446 = vadd.f32 %v582, %v1158
        %v1447 = vadd.f32 %v583, %v1159
        %v1448 = vadd.f32 %v584, %v1160
        %v1449 = vadd.f32 %v585, %v1161
        %v1450 = vadd.f32 %v586, %v1162
        %v1451 = vadd.f32 %v587, %v1163
        %v1452 = vadd.f32 %v588, %v1164
        %v1453 = vadd.f32 %v589, %v1165
        %v1454 = vadd.f32 %v590, %v1166
        %v1455 = vadd.f32 %v591, %v1167
        %v1456 = vadd.f32 %v592, %v1168
        %v1457 = vadd.f32 %v593, %v1169
        %v1458 = vadd.f32 %v594, %v1170
        %v1459 = vadd.f32 %v595, %v1171
        %v1460 = vadd.f32 %v596, %v1172
        %v1461 = vadd.f32 %v597, %v1173
        %v1462 = vadd.f32 %v598, %v1174
        %v1463 = vadd.f32 %v599, %v1175
        %v1464 = vadd.f32 %v600, %v1176
        %v1465 = vadd.f32 %v601, %v1177
        %v1466 = vadd.f32 %v602, %v1178
        %v1467 = vadd.f32 %v603, %v1179
        %v1468 = vadd.f32 %v604, %v1180
        %v1469 = vadd.f32 %v605, %v1181
        %v1470 = vadd.f32 %v606, %v1182
        %v1471 = vadd.f32 %v607, %v1183
        %v1472 = vadd.f32 %v608, %v1184
        %v1473 = vadd.f32 %v609, %v1185
        %v1474 = vadd.f32 %v610, %v1186
        %v1475 = vadd.f32 %v611, %v1187
        %v1476 = vadd.f32 %v612, %v1188
        %v1477 = vadd.f32 %v613, %v1189
        %v1478 = vadd.f32 %v614, %v1190
        %v1479 = vadd.f32 %v615, %v1191
        %v1480 = vadd.f32 %v616, %v1192
        %v1481 = vadd.f32 %v617, %v1193
        %v1482 = vadd.f32 %v618, %v1194
        %v1483 = vadd.f32 %v619, %v1195
        %v1484 = vadd.f32 %v620, %v1196
        %v1485 = vadd.f32 %v621, %v1197
        %v1486 = vadd.f32 %v622, %v1198
        %v1487 = vadd.f32 %v623, %v1199
        %v1488 = vadd.f32 %v624, %v1200
        %v1489 = vadd.f32 %v625, %v1201
        %v1490 = vadd.f32 %v626, %v1202
        %v1491 = vadd.f32 %v627, %v1203
        %v1492 = vadd.f32 %v628, %v1204
        %v1493 = vadd.f32 %v629, %v1205
        %v1494 = vadd.f32 %v630, %v1206
        %v1495 = vadd.f32 %v631, %v1207
        %v1496 = vadd.f32 %v632, %v1208
        %v1497 = vadd.f32 %v633, %v1209
        %v1498 = vadd.f32 %v634, %v1210
        %v1499 = vadd.f32 %v635, %v1211
        %v1500 = vadd.f32 %v636, %v1212
        %v1501 = vadd.f32 %v637, %v1213
        %v1502 = vadd.f32 %v638, %v1214
        %v1503 = vadd.f32 %v639, %v1215
        %v1504 = vadd.f32 %v640, %v1216
        %v1505 = vadd.f32 %v641, %v1217
        %v1506 = vadd.f32 %v642, %v1218
        %v1507 = vadd.f32 %v643, %v1219
        %v1508 = vadd.f32 %v644, %v1220
        %v1509 = vadd.f32 %v645, %v1221
        %v1510 = vadd.f32 %v646, %v1222
        %v1511 = vadd.f32 %v647, %v1223
        %v1512 = vadd.f32 %v648, %v1224
        %v1513 = vadd.f32 %v649, %v1225
        %v1514 = vadd.f32 %v650, %v1226
        %v1515 = vadd.f32 %v651, %v1227
        %v1516 = vadd.f32 %v652, %v1228
        %v1517 = vadd.f32 %v653, %v1229
        %v1518 = vadd.f32 %v654, %v1230
        %v1519 = vadd.f32 %v655, %v1231
        %v1520 = vadd.f32 %v656, %v1232
        %v1521 = vadd.f32 %v657, %v1233
        %v1522 = vadd.f32 %v658, %v1234
        %v1523 = vadd.f32 %v659, %v1235
        %v1524 = vadd.f32 %v660, %v1236
        %v1525 = vadd.f32 %v661, %v1237
        %v1526 = vadd.f32 %v662, %v1238
        %v1527 = vadd.f32 %v663, %v1239
        %v1528 = vadd.f32 %v664, %v1240
        %v1529 = vadd.f32 %v665, %v1241
        %v1530 = vadd.f32 %v666, %v1242
        %v1531 = vadd.f32 %v667, %v1243
        %v1532 = vadd.f32 %v668, %v1244
        %v1533 = vadd.f32 %v669, %v1245
        %v1534 = vadd.f32 %v670, %v1246
        %v1535 = vadd.f32 %v671, %v1247
        %v1536 = vadd.f32 %v672, %v1248
        %v1537 = vadd.f32 %v673, %v1249
        %v1538 = vadd.f32 %v674, %v1250
        %v1539 = vadd.f32 %v675, %v1251
        %v1540 = vadd.f32 %v676, %v1252
        %v1541 = vadd.f32 %v677, %v1253
        %v1542 = vadd.f32 %v678, %v1254
        %v1543 = vadd.f32 %v679, %v1255
        %v1544 = vadd.f32 %v680, %v1256
        %v1545 = vadd.f32 %v681, %v1257
        %v1546 = vadd.f32 %v682, %v1258
        %v1547 = vadd.f32 %v683, %v1259
        %v1548 = vadd.f32 %v684, %v1260
        %v1549 = vadd.f32 %v685, %v1261
        %v1550 = vadd.f32 %v686, %v1262
        %v1551 = vadd.f32 %v687, %v1263
        %v1552 = vadd.f32 %v688, %v1264
        %v1553 = vadd.f32 %v689, %v1265
        %v1554 = vadd.f32 %v690, %v1266
        %v1555 = vadd.f32 %v691, %v1267
        %v1556 = vadd.f32 %v692, %v1268
        %v1557 = vadd.f32 %v693, %v1269
        %v1558 = vadd.f32 %v694, %v1270
        %v1559 = vadd.f32 %v695, %v1271
        %v1560 = vadd.f32 %v696, %v1272
        %v1561 = vadd.f32 %v697, %v1273
        %v1562 = vadd.f32 %v698, %v1274
        %v1563 = vadd.f32 %v699, %v1275
        %v1564 = vadd.f32 %v700, %v1276
        %v1565 = vadd.f32 %v701, %v1277
        %v1566 = vadd.f32 %v702, %v1278
        %v1567 = vadd.f32 %v703, %v1279
        %v1568 = vadd.f32 %v704, %v1280
        %v1569 = vadd.f32 %v705, %v1281
        %v1570 = vadd.f32 %v706, %v1282
        %v1571 = vadd.f32 %v707, %v1283
        %v1572 = vadd.f32 %v708, %v1284
        %v1573 = vadd.f32 %v709, %v1285
        %v1574 = vadd.f32 %v710, %v1286
        %v1575 = vadd.f32 %v711, %v1287
        %v1576 = vadd.f32 %v712, %v1288
        %v1577 = vadd.f32 %v713, %v1289
        %v1578 = vadd.f32 %v714, %v1290
        %v1579 = vadd.f32 %v715, %v1291
        %v1580 = vadd.f32 %v716, %v1292
        %v1581 = vadd.f32 %v717, %v1293
        %v1582 = vadd.f32 %v718, %v1294
        %v1583 = vadd.f32 %v719, %v1295
        %v1584 = vadd.f32 %v720, %v1296
        %v1585 = vadd.f32 %v721, %v1297
        %v1586 = vadd.f32 %v722, %v1298
        %v1587 = vadd.f32 %v723, %v1299
        %v1588 = vadd.f32 %v724, %v1300
        %v1589 = vadd.f32 %v725, %v1301
        %v1590 = vadd.f32 %v726, %v1302
        %v1591 = vadd.f32 %v727, %v1303
        %v1592 = vadd.f32 %v728, %v1304
        %v1593 = vadd.f32 %v729, %v1305
        %v1594 = vadd.f32 %v730, %v1306
        %v1595 = vadd.f32 %v731, %v1307
        %v1596 = vadd.f32 %v732, %v1308
        %v1597 = vadd.f32 %v733, %v1309
        %v1598 = vadd.f32 %v734, %v1310
        %v1599 = vadd.f32 %v735, %v1311
        %v1600 = vadd.f32 %v736, %v1312
        %v1601 = vadd.f32 %v737, %v1313
        %v1602 = vadd.f32 %v738, %v1314
        %v1603 = vadd.f32 %v739, %v1315
        %v1604 = vadd.f32 %v740, %v1316
        %v1605 = vadd.f32 %v741, %v1317
        %v1606 = vadd.f32 %v742, %v1318
        %v1607 = vadd.f32 %v743, %v1319
        %v1608 = vadd.f32 %v744, %v1320
        %v1609 = vadd.f32 %v745, %v1321
        %v1610 = vadd.f32 %v746, %v1322
        %v1611 = vadd.f32 %v747, %v1323
        %v1612 = vadd.f32 %v748, %v1324
        %v1613 = vadd.f32 %v749, %v1325
        %v1614 = vadd.f32 %v750, %v1326
        %v1615 = vadd.f32 %v751, %v1327
        %v1616 = vadd.f32 %v752, %v1328
        %v1617 = vadd.f32 %v753, %v1329
        %v1618 = vadd.f32 %v754, %v1330
        %v1619 = vadd.f32 %v755, %v1331
        %v1620 = vadd.f32 %v756, %v1332
        %v1621 = vadd.f32 %v757, %v1333
        %v1622 = vadd.f32 %v758, %v1334
        %v1623 = vadd.f32 %v759, %v1335
        %v1624 = vadd.f32 %v760, %v1336
        %v1625 = vadd.f32 %v761, %v1337
        %v1626 = vadd.f32 %v762, %v1338
        %v1627 = vadd.f32 %v763, %v1339
        %v1628 = vadd.f32 %v764, %v1340
        %v1629 = vadd.f32 %v765, %v1341
        %v1630 = vadd.f32 %v766, %v1342
        %v1631 = vadd.f32 %v767, %v1343
        %v1632 = vadd.f32 %v768, %v1344
        %v1633 = vadd.f32 %v769, %v1345
        %v1634 = vadd.f32 %v770, %v1346
        %v1635 = vadd.f32 %v771, %v1347
        %v1636 = vadd.f32 %v772, %v1348
        %v1637 = vadd.f32 %v773, %v1349
        %v1638 = vadd.f32 %v774, %v1350
        %v1639 = vadd.f32 %v775, %v1351
        %v1640 = vadd.f32 %v776, %v1352
        %v1641 = vadd.f32 %v777, %v1353
        %v1642 = vadd.f32 %v778, %v1354
        %v1643 = vadd.f32 %v779, %v1355
        %v1644 = vadd.f32 %v780, %v1356
        %v1645 = vmul.f32 %v1357, 0.5
        %v1646 = vmul.f32 %v1358, 0.5
        %v1647 = vmul.f32 %v1359, 0.5
        %v1648 = vmul.f32 %v1360, 0.5
        %v1649 = vmul.f32 %v1361, 0.5
        %v1650 = vmul.f32 %v1362, 0.5
        %v1651 = vmul.f32 %v1363, 0.5
        %v1652 = vmul.f32 %v1364, 0.5
        %v1653 = vmul.f32 %v1365, 0.5
        %v1654 = vmul.f32 %v1366, 0.5
        %v1655 = vmul.f32 %v1367, 0.5
        %v1656 = vmul.f32 %v1368, 0.5
        %v1657 = vmul.f32 %v1369, 0.5
        %v1658 = vmul.f32 %v1370, 0.5
        %v1659 = vmul.f32 %v1371, 0.5
        %v1660 = vmul.f32 %v1372, 0.5
        %v1661 = vmul.f32 %v1373, 0.5
        %v1662 = vmul.f32 %v1374, 0.5
        %v1663 = vmul.f32 %v1375, 0.5
        %v1664 = vmul.f32 %v1376, 0.5
        %v1665 = vmul.f32 %v1377, 0.5
        %v1666 = vmul.f32 %v1378, 0.5
        %v1667 = vmul.f32 %v1379, 0.5
        %v1668 = vmul.f32 %v1380, 0.5
        %v1669 = vmul.f32 %v1381, 0.5
        %v1670 = vmul.f32 %v1382, 0.5
        %v1671 = vmul.f32 %v1383, 0.5
        %v1672 = vmul.f32 %v1384, 0.5
        %v1673 = vmul.f32 %v1385, 0.5
        %v1674 = vmul.f32 %v1386, 0.5
        %v1675 = vmul.f32 %v1387, 0.5
        %v1676 = vmul.f32 %v1388, 0.5
        %v1677 = vmul.f32 %v1389, 0.5
        %v1678 = vmul.f32 %v1390, 0.5
        %v1679 = vmul.f32 %v1391, 0.5
        %v1680 = vmul.f32 %v1392, 0.5
        %v1681 = vmul.f32 %v1393, 0.5
        %v1682 = vmul.f32 %v1394, 0.5
        %v1683 = vmul.f32 %v1395, 0.5
        %v1684 = vmul.f32 %v1396, 0.5
        %v1685 = vmul.f32 %v1397, 0.5
        %v1686 = vmul.f32 %v1398, 0.5
        %v1687 = vmul.f32 %v1399, 0.5
        %v1688 = vmul.f32 %v1400, 0.5
        %v1689 = vmul.f32 %v1401, 0.5
        %v1690 = vmul.f32 %v1402, 0.5
        %v1691 = vmul.f32 %v1403, 0.5
        %v1692 = vmul.f32 %v1404, 0.5
        %v1693 = vmul.f32 %v1405, 0.5
        %v1694 = vmul.f32 %v1406, 0.5
        %v1695 = vmul.f32 %v1407, 0.5
        %v1696 = vmul.f32 %v1408, 0.5
        %v1697 = vmul.f32 %v1409, 0.5
        %v1698 = vmul.f32 %v1410, 0.5
        %v1699 = vmul.f32 %v1411, 0.5
        %v1700 = vmul.f32 %v1412, 0.5
        %v1701 = vmul.f32 %v1413, 0.5
        %v1702 = vmul.f32 %v1414, 0.5
        %v1703 = vmul.f32 %v1415, 0.5
        %v1704 = vmul.f32 %v1416, 0.5
        %v1705 = vmul.f32 %v1417, 0.5
        %v1706 = vmul.f32 %v1418, 0.5
        %v1707 = vmul.f32 %v1419, 0.5
        %v1708 = vmul.f32 %v1420, 0.5
        %v1709 = vmul.f32 %v1421, 0.5
        %v1710 = vmul.f32 %v1422, 0.5
        %v1711 = vmul.f32 %v1423, 0.5
        %v1712 = vmul.f32 %v1424, 0.5
        %v1713 = vmul.f32 %v1425, 0.5
        %v1714 = vmul.f32 %v1426, 0.5
        %v1715 = vmul.f32 %v1427, 0.5
        %v1716 = vmul.f32 %v1428, 0.5
        %v1717 = vmul.f32 %v1429, 0.5
        %v1718 = vmul.f32 %v1430, 0.5
        %v1719 = vmul.f32 %v1431, 0.5
        %v1720 = vmul.f32 %v1432, 0.5
        %v1721 = vmul.f32 %v1433, 0.5
        %v1722 = vmul.f32 %v1434, 0.5
        %v1723 = vmul.f32 %v1435, 0.5
        %v1724 = vmul.f32 %v1436, 0.5
        %v1725 = vmul.f32 %v1437, 0.5
        %v1726 = vmul.f32 %v1438, 0.5
        %v1727 = vmul.f32 %v1439, 0.5
        %v1728 = vmul.f32 %v1440, 0.5
        %v1729 = vmul.f32 %v1441, 0.5
        %v1730 = vmul.f32 %v1442, 0.5
        %v1731 = vmul.f32 %v1443, 0.5
        %v1732 = vmul.f32 %v1444, 0.5
        %v1733 = vmul.f32 %v1445, 0.5
        %v1734 = vmul.f32 %v1446, 0.5
        %v1735 = vmul.f32 %v1447, 0.5
        %v1736 = vmul.f32 %v1448, 0.5
        %v1737 = vmul.f32 %v1449, 0.5
        %v1738 = vmul.f32 %v1450, 0.5
        %v1739 = vmul.f32 %v1451, 0.5
        %v1740 = vmul.f32 %v1452, 0.5
        %v1741 = vmul.f32 %v1453, 0.5
        %v1742 = vmul.f32 %v1454, 0.5
        %v1743 = vmul.f32 %v1455, 0.5
        %v1744 = vmul.f32 %v1456, 0.5
        %v1745 = vmul.f32 %v1457, 0.5
        %v1746 = vmul.f32 %v1458, 0.5
        %v1747 = vmul.f32 %v1459, 0.5
        %v1748 = vmul.f32 %v1460, 0.5
        %v1749 = vmul.f32 %v1461, 0.5
        %v1750 = vmul.f32 %v1462, 0.5
        %v1751 = vmul.f32 %v1463, 0.5
        %v1752 = vmul.f32 %v1464, 0.5
        %v1753 = vmul.f32 %v1465, 0.5
        %v1754 = vmul.f32 %v1466, 0.5
        %v1755 = vmul.f32 %v1467, 0.5
        %v1756 = vmul.f32 %v1468, 0.5
        %v1757 = vmul.f32 %v1469, 0.5
        %v1758 = vmul.f32 %v1470, 0.5
        %v1759 = vmul.f32 %v1471, 0.5
        %v1760 = vmul.f32 %v1472, 0.5
        %v1761 = vmul.f32 %v1473, 0.5
        %v1762 = vmul.f32 %v1474, 0.5
        %v1763 = vmul.f32 %v1475, 0.5
        %v1764 = vmul.f32 %v1476, 0.5
        %v1765 = vmul.f32 %v1477, 0.5
        %v1766 = vmul.f32 %v1478, 0.5
        %v1767 = vmul.f32 %v1479, 0.5
        %v1768 = vmul.f32 %v1480, 0.5
        %v1769 = vmul.f32 %v1481, 0.5
        %v1770 = vmul.f32 %v1482, 0.5
        %v1771 = vmul.f32 %v1483, 0.5
        %v1772 = vmul.f32 %v1484, 0.5
        %v1773 = vmul.f32 %v1485, 0.5
        %v1774 = vmul.f32 %v1486, 0.5
        %v1775 = vmul.f32 %v1487, 0.5
        %v1776 = vmul.f32 %v1488, 0.5
        %v1777 = vmul.f32 %v1489, 0.5
        %v1778 = vmul.f32 %v1490, 0.5
        %v1779 = vmul.f32 %v1491, 0.5
        %v1780 = vmul.f32 %v1492, 0.5
        %v1781 = vmul.f32 %v1493, 0.5
        %v1782 = vmul.f32 %v1494, 0.5
        %v1783 = vmul.f32 %v1495, 0.5
        %v1784 = vmul.f32 %v1496, 0.5
        %v1785 = vmul.f32 %v1497, 0.5
        %v1786 = vmul.f32 %v1498, 0.5
        %v1787 = vmul.f32 %v1499, 0.5
        %v1788 = vmul.f32 %v1500, 0.5
        %v1789 = vmul.f32 %v1501, 0.5
        %v1790 = vmul.f32 %v1502, 0.5
        %v1791 = vmul.f32 %v1503, 0.5
        %v1792 = vmul.f32 %v1504, 0.5
        %v1793 = vmul.f32 %v1505, 0.5
        %v1794 = vmul.f32 %v1506, 0.5
        %v1795 = vmul.f32 %v1507, 0.5
        %v1796 = vmul.f32 %v1508, 0.5
        %v1797 = vmul.f32 %v1509, 0.5
        %v1798 = vmul.f32 %v1510, 0.5
        %v1799 = vmul.f32 %v1511, 0.5
        %v1800 = vmul.f32 %v1512, 0.5
        %v1801 = vmul.f32 %v1513, 0.5
        %v1802 = vmul.f32 %v1514, 0.5
        %v1803 = vmul.f32 %v1515, 0.5
        %v1804 = vmul.f32 %v1516, 0.5
        %v1805 = vmul.f32 %v1517, 0.5
        %v1806 = vmul.f32 %v1518, 0.5
        %v1807 = vmul.f32 %v1519, 0.5
        %v1808 = vmul.f32 %v1520, 0.5
        %v1809 = vmul.f32 %v1521, 0.5
        %v1810 = vmul.f32 %v1522, 0.5
        %v1811 = vmul.f32 %v1523, 0.5
        %v1812 = vmul.f32 %v1524, 0.5
        %v1813 = vmul.f32 %v1525, 0.5
        %v1814 = vmul.f32 %v1526, 0.5
        %v1815 = vmul.f32 %v1527, 0.5
        %v1816 = vmul.f32 %v1528, 0.5
        %v1817 = vmul.f32 %v1529, 0.5
        %v1818 = vmul.f32 %v1530, 0.5
        %v1819 = vmul.f32 %v1531, 0.5
        %v1820 = vmul.f32 %v1532, 0.5
        %v1821 = vmul.f32 %v1533, 0.5
        %v1822 = vmul.f32 %v1534, 0.5
        %v1823 = vmul.f32 %v1535, 0.5
        %v1824 = vmul.f32 %v1536, 0.5
        %v1825 = vmul.f32 %v1537, 0.5
        %v1826 = vmul.f32 %v1538, 0.5
        %v1827 = vmul.f32 %v1539, 0.5
        %v1828 = vmul.f32 %v1540, 0.5
        %v1829 = vmul.f32 %v1541, 0.5
        %v1830 = vmul.f32 %v1542, 0.5
        %v1831 = vmul.f32 %v1543, 0.5
        %v1832 = vmul.f32 %v1544, 0.5
        %v1833 = vmul.f32 %v1545, 0.5
        %v1834 = vmul.f32 %v1546, 0.5
        %v1835 = vmul.f32 %v1547, 0.5
        %v1836 = vmul.f32 %v1548, 0.5
        %v1837 = vmul.f32 %v1549, 0.5
        %v1838 = vmul.f32 %v1550, 0.5
        %v1839 = vmul.f32 %v1551, 0.5
        %v1840 = vmul.f32 %v1552, 0.5
        %v1841 = vmul.f32 %v1553, 0.5
        %v1842 = vmul.f32 %v1554, 0.5
        %v1843 = vmul.f32 %v1555, 0.5
        %v1844 = vmul.f32 %v1556, 0.5
        %v1845 = vmul.f32 %v1557, 0.5
        %v1846 = vmul.f32 %v1558, 0.5
        %v1847 = vmul.f32 %v1559, 0.5
        %v1848 = vmul.f32 %v1560, 0.5
        %v1849 = vmul.f32 %v1561, 0.5
        %v1850 = vmul.f32 %v1562, 0.5
        %v1851 = vmul.f32 %v1563, 0.5
        %v1852 = vmul.f32 %v1564, 0.5
        %v1853 = vmul.f32 %v1565, 0.5
        %v1854 = vmul.f32 %v1566, 0.5
        %v1855 = vmul.f32 %v1567, 0.5
        %v1856 = vmul.f32 %v1568, 0.5
        %v1857 = vmul.f32 %v1569, 0.5
        %v1858 = vmul.f32 %v1570, 0.5
        %v1859 = vmul.f32 %v1571, 0.5
        %v1860 = vmul.f32 %v1572, 0.5
        %v1861 = vmul.f32 %v1573, 0.5
        %v1862 = vmul.f32 %v1574, 0.5
        %v1863 = vmul.f32 %v1575, 0.5
        %v1864 = vmul.f32 %v1576, 0.5
        %v1865 = vmul.f32 %v1577, 0.5
        %v1866 = vmul.f32 %v1578, 0.5
        %v1867 = vmul.f32 %v1579, 0.5
        %v1868 = vmul.f32 %v1580, 0.5
        %v1869 = vmul.f32 %v1581, 0.5
        %v1870 = vmul.f32 %v1582, 0.5
        %v1871 = vmul.f32 %v1583, 0.5
        %v1872 = vmul.f32 %v1584, 0.5
        %v1873 = vmul.f32 %v1585, 0.5
        %v1874 = vmul.f32 %v1586, 0.5
        %v1875 = vmul.f32 %v1587, 0.5
        %v1876 = vmul.f32 %v1588, 0.5
        %v1877 = vmul.f32 %v1589, 0.5
        %v1878 = vmul.f32 %v1590, 0.5
        %v1879 = vmul.f32 %v1591, 0.5
        %v1880 = vmul.f32 %v1592, 0.5
        %v1881 = vmul.f32 %v1593, 0.5
        %v1882 = vmul.f32 %v1594, 0.5
        %v1883 = vmul.f32 %v1595, 0.5
        %v1884 = vmul.f32 %v1596, 0.5
        %v1885 = vmul.f32 %v1597, 0.5
        %v1886 = vmul.f32 %v1598, 0.5
        %v1887 = vmul.f32 %v1599, 0.5
        %v1888 = vmul.f32 %v1600, 0.5
        %v1889 = vmul.f32 %v1601, 0.5
        %v1890 = vmul.f32 %v1602, 0.5
        %v1891 = vmul.f32 %v1603, 0.5
        %v1892 = vmul.f32 %v1604, 0.5
        %v1893 = vmul.f32 %v1605, 0.5
        %v1894 = vmul.f32 %v1606, 0.5
        %v1895 = vmul.f32 %v1607, 0.5
        %v1896 = vmul.f32 %v1608, 0.5
        %v1897 = vmul.f32 %v1609, 0.5
        %v1898 = vmul.f32 %v1610, 0.5
        %v1899 = vmul.f32 %v1611, 0.5
        %v1900 = vmul.f32 %v1612, 0.5
        %v1901 = vmul.f32 %v1613, 0.5
        %v1902 = vmul.f32 %v1614, 0.5
        %v1903 = vmul.f32 %v1615, 0.5
        %v1904 = vmul.f32 %v1616, 0.5
        %v1905 = vmul.f32 %v1617, 0.5
        %v1906 = vmul.f32 %v1618, 0.5
        %v1907 = vmul.f32 %v1619, 0.5
        %v1908 = vmul.f32 %v1620, 0.5
        %v1909 = vmul.f32 %v1621, 0.5
        %v1910 = vmul.f32 %v1622, 0.5
        %v1911 = vmul.f32 %v1623, 0.5
        %v1912 = vmul.f32 %v1624, 0.5
        %v1913 = vmul.f32 %v1625, 0.5
        %v1914 = vmul.f32 %v1626, 0.5
        %v1915 = vmul.f32 %v1627, 0.5
        %v1916 = vmul.f32 %v1628, 0.5
        %v1917 = vmul.f32 %v1629, 0.5
        %v1918 = vmul.f32 %v1630, 0.5
        %v1919 = vmul.f32 %v1631, 0.5
        %v1920 = vmul.f32 %v1632, 0.5
        %v1921 = vmul.f32 %v1633, 0.5
        %v1922 = vmul.f32 %v1634, 0.5
        %v1923 = vmul.f32 %v1635, 0.5
        %v1924 = vmul.f32 %v1636, 0.5
        %v1925 = vmul.f32 %v1637, 0.5
        %v1926 = vmul.f32 %v1638, 0.5
        %v1927 = vmul.f32 %v1639, 0.5
        %v1928 = vmul.f32 %v1640, 0.5
        %v1929 = vmul.f32 %v1641, 0.5
        %v1930 = vmul.f32 %v1642, 0.5
        %v1931 = vmul.f32 %v1643, 0.5
        %v1932 = vmul.f32 %v1644, 0.5
        %1933 = vst [vmem:[%s201] sm:$0xff] %v1645
        %1934 = vst [vmem:[%s201 + $0x8] sm:$0xff] %v1646
        %1935 = vst [vmem:[%s201 + $0x10] sm:$0xff] %v1647
        %1936 = vst [vmem:[%s201 + $0x18] sm:$0xff] %v1648
        %1937 = vst [vmem:[%s201 + $0x20] sm:$0xff] %v1649
        %1938 = vst [vmem:[%s201 + $0x28] sm:$0xff] %v1650
        %1939 = vst [vmem:[%s201 + $0x30] sm:$0xff] %v1651
        %1940 = vst [vmem:[%s201 + $0x38] sm:$0xff] %v1652
        %1941 = vst [vmem:[%s201 + $0x40] sm:$0xff] %v1653
        %1942 = vst [vmem:[%s201 + $0x48] sm:$0xff] %v1654
        %1943 = vst [vmem:[%s201 + $0x50] sm:$0xff] %v1655
        %1944 = vst [vmem:[%s201 + $0x58] sm:$0xff] %v1656
        %1945 = vst [vmem:[%s201 + $0x60] sm:$0xff] %v1657
        %1946 = vst [vmem:[%s201 + $0x68] sm:$0xff] %v1658
        %1947 = vst [vmem:[%s201 + $0x70] sm:$0xff] %v1659
        %1948 = vst [vmem:[%s201 + $0x78] sm:$0xff] %v1660
        %1949 = vst [vmem:[%s201 + $0x80] sm:$0xff] %v1661
        %1950 = vst [vmem:[%s201 + $0x88] sm:$0xff] %v1662
        %1951 = vst [vmem:[%s201 + $0x90] sm:$0xff] %v1663
        %1952 = vst [vmem:[%s201 + $0x98] sm:$0xff] %v1664
        %1953 = vst [vmem:[%s201 + $0xa0] sm:$0xff] %v1665
        %1954 = vst [vmem:[%s201 + $0xa8] sm:$0xff] %v1666
        %1955 = vst [vmem:[%s201 + $0xb0] sm:$0xff] %v1667
        %1956 = vst [vmem:[%s201 + $0xb8] sm:$0xff] %v1668
        %1957 = vst [vmem:[%s201 + $0xc0] sm:$0xff] %v1669
        %1958 = vst [vmem:[%s201 + $0xc8] sm:$0xff] %v1670
        %1959 = vst [vmem:[%s201 + $0xd0] sm:$0xff] %v1671
        %1960 = vst [vmem:[%s201 + $0xd8] sm:$0xff] %v1672
        %1961 = vst [vmem:[%s201 + $0xe0] sm:$0xff] %v1673
        %1962 = vst [vmem:[%s201 + $0xe8] sm:$0xff] %v1674
        %1963 = vst [vmem:[%s201 + $0xf0] sm:$0xff] %v1675
        %1964 = vst [vmem:[%s201 + $0xf8] sm:$0xff] %v1676
        %1965 = vst [vmem:[%s201 + $0x100] sm:$0xff] %v1677
        %1966 = vst [vmem:[%s201 + $0x108] sm:$0xff] %v1678
        %1967 = vst [vmem:[%s201 + $0x110] sm:$0xff] %v1679
        %1968 = vst [vmem:[%s201 + $0x118] sm:$0xff] %v1680
        %1969 = vst [vmem:[%s201 + $0x120] sm:$0xff] %v1681
        %1970 = vst [vmem:[%s201 + $0x128] sm:$0xff] %v1682
        %1971 = vst [vmem:[%s201 + $0x130] sm:$0xff] %v1683
        %1972 = vst [vmem:[%s201 + $0x138] sm:$0xff] %v1684
        %1973 = vst [vmem:[%s201 + $0x140] sm:$0xff] %v1685
        %1974 = vst [vmem:[%s201 + $0x148] sm:$0xff] %v1686
        %1975 = vst [vmem:[%s201 + $0x150] sm:$0xff] %v1687
        %1976 = vst [vmem:[%s201 + $0x158] sm:$0xff] %v1688
        %1977 = vst [vmem:[%s201 + $0x160] sm:$0xff] %v1689
        %1978 = vst [vmem:[%s201 + $0x168] sm:$0xff] %v1690
        %1979 = vst [vmem:[%s201 + $0x170] sm:$0xff] %v1691
        %1980 = vst [vmem:[%s201 + $0x178] sm:$0xff] %v1692
        %1981 = vst [vmem:[%s201 + $0x180] sm:$0xff] %v1693
        %1982 = vst [vmem:[%s201 + $0x188] sm:$0xff] %v1694
        %1983 = vst [vmem:[%s201 + $0x190] sm:$0xff] %v1695
        %1984 = vst [vmem:[%s201 + $0x198] sm:$0xff] %v1696
        %1985 = vst [vmem:[%s201 + $0x1a0] sm:$0xff] %v1697
        %1986 = vst [vmem:[%s201 + $0x1a8] sm:$0xff] %v1698
        %1987 = vst [vmem:[%s201 + $0x1b0] sm:$0xff] %v1699
        %1988 = vst [vmem:[%s201 + $0x1b8] sm:$0xff] %v1700
        %1989 = vst [vmem:[%s201 + $0x1c0] sm:$0xff] %v1701
        %1990 = vst [vmem:[%s201 + $0x1c8] sm:$0xff] %v1702
        %1991 = vst [vmem:[%s201 + $0x1d0] sm:$0xff] %v1703
        %1992 = vst [vmem:[%s201 + $0x1d8] sm:$0xff] %v1704
        %1993 = vst [vmem:[%s201 + $0x1e0] sm:$0xff] %v1705
        %1994 = vst [vmem:[%s201 + $0x1e8] sm:$0xff] %v1706
        %1995 = vst [vmem:[%s201 + $0x1f0] sm:$0xff] %v1707
        %1996 = vst [vmem:[%s201 + $0x1f8] sm:$0xff] %v1708
        %1997 = vst [vmem:[%s201 + $0x200] sm:$0xff] %v1709
        %1998 = vst [vmem:[%s201 + $0x208] sm:$0xff] %v1710
        %1999 = vst [vmem:[%s201 + $0x210] sm:$0xff] %v1711
        %2000 = vst [vmem:[%s201 + $0x218] sm:$0xff] %v1712
        %2001 = vst [vmem:[%s201 + $0x220] sm:$0xff] %v1713
        %2002 = vst [vmem:[%s201 + $0x228] sm:$0xff] %v1714
        %2003 = vst [vmem:[%s201 + $0x230] sm:$0xff] %v1715
        %2004 = vst [vmem:[%s201 + $0x238] sm:$0xff] %v1716
        %2005 = vst [vmem:[%s201 + $0x240] sm:$0xff] %v1717
        %2006 = vst [vmem:[%s201 + $0x248] sm:$0xff] %v1718
        %2007 = vst [vmem:[%s201 + $0x250] sm:$0xff] %v1719
        %2008 = vst [vmem:[%s201 + $0x258] sm:$0xff] %v1720
        %2009 = vst [vmem:[%s201 + $0x260] sm:$0xff] %v1721
        %2010 = vst [vmem:[%s201 + $0x268] sm:$0xff] %v1722
        %2011 = vst [vmem:[%s201 + $0x270] sm:$0xff] %v1723
        %2012 = vst [vmem:[%s201 + $0x278] sm:$0xff] %v1724
        %2013 = vst [vmem:[%s201 + $0x280] sm:$0xff] %v1725
        %2014 = vst [vmem:[%s201 + $0x288] sm:$0xff] %v1726
        %2015 = vst [vmem:[%s201 + $0x290] sm:$0xff] %v1727
        %2016 = vst [vmem:[%s201 + $0x298] sm:$0xff] %v1728
        %2017 = vst [vmem:[%s201 + $0x2a0] sm:$0xff] %v1729
        %2018 = vst [vmem:[%s201 + $0x2a8] sm:$0xff] %v1730
        %2019 = vst [vmem:[%s201 + $0x2b0] sm:$0xff] %v1731
        %2020 = vst [vmem:[%s201 + $0x2b8] sm:$0xff] %v1732
        %2021 = vst [vmem:[%s201 + $0x2c0] sm:$0xff] %v1733
        %2022 = vst [vmem:[%s201 + $0x2c8] sm:$0xff] %v1734
        %2023 = vst [vmem:[%s201 + $0x2d0] sm:$0xff] %v1735
        %2024 = vst [vmem:[%s201 + $0x2d8] sm:$0xff] %v1736
        %2025 = vst [vmem:[%s201 + $0x2e0] sm:$0xff] %v1737
        %2026 = vst [vmem:[%s201 + $0x2e8] sm:$0xff] %v1738
        %2027 = vst [vmem:[%s201 + $0x2f0] sm:$0xff] %v1739
        %2028 = vst [vmem:[%s201 + $0x2f8] sm:$0xff] %v1740
        %2029 = vst [vmem:[%s201 + $0x300] sm:$0xff] %v1741
        %2030 = vst [vmem:[%s201 + $0x308] sm:$0xff] %v1742
        %2031 = vst [vmem:[%s201 + $0x310] sm:$0xff] %v1743
        %2032 = vst [vmem:[%s201 + $0x318] sm:$0xff] %v1744
        %2033 = vst [vmem:[%s201 + $0x320] sm:$0xff] %v1745
        %2034 = vst [vmem:[%s201 + $0x328] sm:$0xff] %v1746
        %2035 = vst [vmem:[%s201 + $0x330] sm:$0xff] %v1747
        %2036 = vst [vmem:[%s201 + $0x338] sm:$0xff] %v1748
        %2037 = vst [vmem:[%s201 + $0x340] sm:$0xff] %v1749
        %2038 = vst [vmem:[%s201 + $0x348] sm:$0xff] %v1750
        %2039 = vst [vmem:[%s201 + $0x350] sm:$0xff] %v1751
        %2040 = vst [vmem:[%s201 + $0x358] sm:$0xff] %v1752
        %2041 = vst [vmem:[%s201 + $0x360] sm:$0xff] %v1753
        %2042 = vst [vmem:[%s201 + $0x368] sm:$0xff] %v1754
        %2043 = vst [vmem:[%s201 + $0x370] sm:$0xff] %v1755
        %2044 = vst [vmem:[%s201 + $0x378] sm:$0xff] %v1756
        %2045 = vst [vmem:[%s201 + $0x380] sm:$0xff] %v1757
        %2046 = vst [vmem:[%s201 + $0x388] sm:$0xff] %v1758
        %2047 = vst [vmem:[%s201 + $0x390] sm:$0xff] %v1759
        %2048 = vst [vmem:[%s201 + $0x398] sm:$0xff] %v1760
        %2049 = vst [vmem:[%s201 + $0x3a0] sm:$0xff] %v1761
        %2050 = vst [vmem:[%s201 + $0x3a8] sm:$0xff] %v1762
        %2051 = vst [vmem:[%s201 + $0x3b0] sm:$0xff] %v1763
        %2052 = vst [vmem:[%s201 + $0x3b8] sm:$0xff] %v1764
        %2053 = vst [vmem:[%s201 + $0x3c0] sm:$0xff] %v1765
        %2054 = vst [vmem:[%s201 + $0x3c8] sm:$0xff] %v1766
        %2055 = vst [vmem:[%s201 + $0x3d0] sm:$0xff] %v1767
        %2056 = vst [vmem:[%s201 + $0x3d8] sm:$0xff] %v1768
        %2057 = vst [vmem:[%s201 + $0x3e0] sm:$0xff] %v1769
        %2058 = vst [vmem:[%s201 + $0x3e8] sm:$0xff] %v1770
        %2059 = vst [vmem:[%s201 + $0x3f0] sm:$0xff] %v1771
        %2060 = vst [vmem:[%s201 + $0x3f8] sm:$0xff] %v1772
        %2061 = vst [vmem:[%s201 + $0x400] sm:$0xff] %v1773
        %2062 = vst [vmem:[%s201 + $0x408] sm:$0xff] %v1774
        %2063 = vst [vmem:[%s201 + $0x410] sm:$0xff] %v1775
        %2064 = vst [vmem:[%s201 + $0x418] sm:$0xff] %v1776
        %2065 = vst [vmem:[%s201 + $0x420] sm:$0xff] %v1777
        %2066 = vst [vmem:[%s201 + $0x428] sm:$0xff] %v1778
        %2067 = vst [vmem:[%s201 + $0x430] sm:$0xff] %v1779
        %2068 = vst [vmem:[%s201 + $0x438] sm:$0xff] %v1780
        %2069 = vst [vmem:[%s201 + $0x440] sm:$0xff] %v1781
        %2070 = vst [vmem:[%s201 + $0x448] sm:$0xff] %v1782
        %2071 = vst [vmem:[%s201 + $0x450] sm:$0xff] %v1783
        %2072 = vst [vmem:[%s201 + $0x458] sm:$0xff] %v1784
        %2073 = vst [vmem:[%s201 + $0x460] sm:$0xff] %v1785
        %2074 = vst [vmem:[%s201 + $0x468] sm:$0xff] %v1786
        %2075 = vst [vmem:[%s201 + $0x470] sm:$0xff] %v1787
        %2076 = vst [vmem:[%s201 + $0x478] sm:$0xff] %v1788
        %2077 = vst [vmem:[%s201 + $0x480] sm:$0xff] %v1789
        %2078 = vst [vmem:[%s201 + $0x488] sm:$0xff] %v1790
        %2079 = vst [vmem:[%s201 + $0x490] sm:$0xff] %v1791
        %2080 = vst [vmem:[%s201 + $0x498] sm:$0xff] %v1792
        %2081 = vst [vmem:[%s201 + $0x4a0] sm:$0xff] %v1793
        %2082 = vst [vmem:[%s201 + $0x4a8] sm:$0xff] %v1794
        %2083 = vst [vmem:[%s201 + $0x4b0] sm:$0xff] %v1795
        %2084 = vst [vmem:[%s201 + $0x4b8] sm:$0xff] %v1796
        %2085 = vst [vmem:[%s201 + $0x4c0] sm:$0xff] %v1797
        %2086 = vst [vmem:[%s201 + $0x4c8] sm:$0xff] %v1798
        %2087 = vst [vmem:[%s201 + $0x4d0] sm:$0xff] %v1799
        %2088 = vst [vmem:[%s201 + $0x4d8] sm:$0xff] %v1800
        %2089 = vst [vmem:[%s201 + $0x4e0] sm:$0xff] %v1801
        %2090 = vst [vmem:[%s201 + $0x4e8] sm:$0xff] %v1802
        %2091 = vst [vmem:[%s201 + $0x4f0] sm:$0xff] %v1803
        %2092 = vst [vmem:[%s201 + $0x4f8] sm:$0xff] %v1804
        %2093 = vst [vmem:[%s201 + $0x500] sm:$0xff] %v1805
        %2094 = vst [vmem:[%s201 + $0x508] sm:$0xff] %v1806
        %2095 = vst [vmem:[%s201 + $0x510] sm:$0xff] %v1807
        %2096 = vst [vmem:[%s201 + $0x518] sm:$0xff] %v1808
        %2097 = vst [vmem:[%s201 + $0x520] sm:$0xff] %v1809
        %2098 = vst [vmem:[%s201 + $0x528] sm:$0xff] %v1810
        %2099 = vst [vmem:[%s201 + $0x530] sm:$0xff] %v1811
        %2100 = vst [vmem:[%s201 + $0x538] sm:$0xff] %v1812
        %2101 = vst [vmem:[%s201 + $0x540] sm:$0xff] %v1813
        %2102 = vst [vmem:[%s201 + $0x548] sm:$0xff] %v1814
        %2103 = vst [vmem:[%s201 + $0x550] sm:$0xff] %v1815
        %2104 = vst [vmem:[%s201 + $0x558] sm:$0xff] %v1816
        %2105 = vst [vmem:[%s201 + $0x560] sm:$0xff] %v1817
        %2106 = vst [vmem:[%s201 + $0x568] sm:$0xff] %v1818
        %2107 = vst [vmem:[%s201 + $0x570] sm:$0xff] %v1819
        %2108 = vst [vmem:[%s201 + $0x578] sm:$0xff] %v1820
        %2109 = vst [vmem:[%s201 + $0x580] sm:$0xff] %v1821
        %2110 = vst [vmem:[%s201 + $0x588] sm:$0xff] %v1822
        %2111 = vst [vmem:[%s201 + $0x590] sm:$0xff] %v1823
        %2112 = vst [vmem:[%s201 + $0x598] sm:$0xff] %v1824
        %2113 = vst [vmem:[%s201 + $0x5a0] sm:$0xff] %v1825
        %2114 = vst [vmem:[%s201 + $0x5a8] sm:$0xff] %v1826
        %2115 = vst [vmem:[%s201 + $0x5b0] sm:$0xff] %v1827
        %2116 = vst [vmem:[%s201 + $0x5b8] sm:$0xff] %v1828
        %2117 = vst [vmem:[%s201 + $0x5c0] sm:$0xff] %v1829
        %2118 = vst [vmem:[%s201 + $0x5c8] sm:$0xff] %v1830
        %2119 = vst [vmem:[%s201 + $0x5d0] sm:$0xff] %v1831
        %2120 = vst [vmem:[%s201 + $0x5d8] sm:$0xff] %v1832
        %2121 = vst [vmem:[%s201 + $0x5e0] sm:$0xff] %v1833
        %2122 = vst [vmem:[%s201 + $0x5e8] sm:$0xff] %v1834
        %2123 = vst [vmem:[%s201 + $0x5f0] sm:$0xff] %v1835
        %2124 = vst [vmem:[%s201 + $0x5f8] sm:$0xff] %v1836
        %2125 = vst [vmem:[%s201 + $0x600] sm:$0xff] %v1837
        %2126 = vst [vmem:[%s201 + $0x608] sm:$0xff] %v1838
        %2127 = vst [vmem:[%s201 + $0x610] sm:$0xff] %v1839
        %2128 = vst [vmem:[%s201 + $0x618] sm:$0xff] %v1840
        %2129 = vst [vmem:[%s201 + $0x620] sm:$0xff] %v1841
        %2130 = vst [vmem:[%s201 + $0x628] sm:$0xff] %v1842
        %2131 = vst [vmem:[%s201 + $0x630] sm:$0xff] %v1843
        %2132 = vst [vmem:[%s201 + $0x638] sm:$0xff] %v1844
        %2133 = vst [vmem:[%s201 + $0x640] sm:$0xff] %v1845
        %2134 = vst [vmem:[%s201 + $0x648] sm:$0xff] %v1846
        %2135 = vst [vmem:[%s201 + $0x650] sm:$0xff] %v1847
        %2136 = vst [vmem:[%s201 + $0x658] sm:$0xff] %v1848
        %2137 = vst [vmem:[%s201 + $0x660] sm:$0xff] %v1849
        %2138 = vst [vmem:[%s201 + $0x668] sm:$0xff] %v1850
        %2139 = vst [vmem:[%s201 + $0x670] sm:$0xff] %v1851
        %2140 = vst [vmem:[%s201 + $0x678] sm:$0xff] %v1852
        %2141 = vst [vmem:[%s201 + $0x680] sm:$0xff] %v1853
        %2142 = vst [vmem:[%s201 + $0x688] sm:$0xff] %v1854
        %2143 = vst [vmem:[%s201 + $0x690] sm:$0xff] %v1855
        %2144 = vst [vmem:[%s201 + $0x698] sm:$0xff] %v1856
        %2145 = vst [vmem:[%s201 + $0x6a0] sm:$0xff] %v1857
        %2146 = vst [vmem:[%s201 + $0x6a8] sm:$0xff] %v1858
        %2147 = vst [vmem:[%s201 + $0x6b0] sm:$0xff] %v1859
        %2148 = vst [vmem:[%s201 + $0x6b8] sm:$0xff] %v1860
        %2149 = vst [vmem:[%s201 + $0x6c0] sm:$0xff] %v1861
        %2150 = vst [vmem:[%s201 + $0x6c8] sm:$0xff] %v1862
        %2151 = vst [vmem:[%s201 + $0x6d0] sm:$0xff] %v1863
        %2152 = vst [vmem:[%s201 + $0x6d8] sm:$0xff] %v1864
        %2153 = vst [vmem:[%s201 + $0x6e0] sm:$0xff] %v1865
        %2154 = vst [vmem:[%s201 + $0x6e8] sm:$0xff] %v1866
        %2155 = vst [vmem:[%s201 + $0x6f0] sm:$0xff] %v1867
        %2156 = vst [vmem:[%s201 + $0x6f8] sm:$0xff] %v1868
        %2157 = vst [vmem:[%s201 + $0x700] sm:$0xff] %v1869
        %2158 = vst [vmem:[%s201 + $0x708] sm:$0xff] %v1870
        %2159 = vst [vmem:[%s201 + $0x710] sm:$0xff] %v1871
        %2160 = vst [vmem:[%s201 + $0x718] sm:$0xff] %v1872
        %2161 = vst [vmem:[%s201 + $0x720] sm:$0xff] %v1873
        %2162 = vst [vmem:[%s201 + $0x728] sm:$0xff] %v1874
        %2163 = vst [vmem:[%s201 + $0x730] sm:$0xff] %v1875
        %2164 = vst [vmem:[%s201 + $0x738] sm:$0xff] %v1876
        %2165 = vst [vmem:[%s201 + $0x740] sm:$0xff] %v1877
        %2166 = vst [vmem:[%s201 + $0x748] sm:$0xff] %v1878
        %2167 = vst [vmem:[%s201 + $0x750] sm:$0xff] %v1879
        %2168 = vst [vmem:[%s201 + $0x758] sm:$0xff] %v1880
        %2169 = vst [vmem:[%s201 + $0x760] sm:$0xff] %v1881
        %2170 = vst [vmem:[%s201 + $0x768] sm:$0xff] %v1882
        %2171 = vst [vmem:[%s201 + $0x770] sm:$0xff] %v1883
        %2172 = vst [vmem:[%s201 + $0x778] sm:$0xff] %v1884
        %2173 = vst [vmem:[%s201 + $0x780] sm:$0xff] %v1885
        %2174 = vst [vmem:[%s201 + $0x788] sm:$0xff] %v1886
        %2175 = vst [vmem:[%s201 + $0x790] sm:$0xff] %v1887
        %2176 = vst [vmem:[%s201 + $0x798] sm:$0xff] %v1888
        %2177 = vst [vmem:[%s201 + $0x7a0] sm:$0xff] %v1889
        %2178 = vst [vmem:[%s201 + $0x7a8] sm:$0xff] %v1890
        %2179 = vst [vmem:[%s201 + $0x7b0] sm:$0xff] %v1891
        %2180 = vst [vmem:[%s201 + $0x7b8] sm:$0xff] %v1892
        %2181 = vst [vmem:[%s201 + $0x7c0] sm:$0xff] %v1893
        %2182 = vst [vmem:[%s201 + $0x7c8] sm:$0xff] %v1894
        %2183 = vst [vmem:[%s201 + $0x7d0] sm:$0xff] %v1895
        %2184 = vst [vmem:[%s201 + $0x7d8] sm:$0xff] %v1896
        %2185 = vst [vmem:[%s201 + $0x7e0] sm:$0xff] %v1897
        %2186 = vst [vmem:[%s201 + $0x7e8] sm:$0xff] %v1898
        %2187 = vst [vmem:[%s201 + $0x7f0] sm:$0xff] %v1899
        %2188 = vst [vmem:[%s201 + $0x7f8] sm:$0xff] %v1900
        %2189 = vst [vmem:[%s201 + $0x800] sm:$0xff] %v1901
        %2190 = vst [vmem:[%s201 + $0x808] sm:$0xff] %v1902
        %2191 = vst [vmem:[%s201 + $0x810] sm:$0xff] %v1903
        %2192 = vst [vmem:[%s201 + $0x818] sm:$0xff] %v1904
        %2193 = vst [vmem:[%s201 + $0x820] sm:$0xff] %v1905
        %2194 = vst [vmem:[%s201 + $0x828] sm:$0xff] %v1906
        %2195 = vst [vmem:[%s201 + $0x830] sm:$0xff] %v1907
        %2196 = vst [vmem:[%s201 + $0x838] sm:$0xff] %v1908
        %2197 = vst [vmem:[%s201 + $0x840] sm:$0xff] %v1909
        %2198 = vst [vmem:[%s201 + $0x848] sm:$0xff] %v1910
        %2199 = vst [vmem:[%s201 + $0x850] sm:$0xff] %v1911
        %2200 = vst [vmem:[%s201 + $0x858] sm:$0xff] %v1912
        %2201 = vst [vmem:[%s201 + $0x860] sm:$0xff] %v1913
        %2202 = vst [vmem:[%s201 + $0x868] sm:$0xff] %v1914
        %2203 = vst [vmem:[%s201 + $0x870] sm:$0xff] %v1915
        %2204 = vst [vmem:[%s201 + $0x878] sm:$0xff] %v1916
        %2205 = vst [vmem:[%s201 + $0x880] sm:$0xff] %v1917
        %2206 = vst [vmem:[%s201 + $0x888] sm:$0xff] %v1918
        %2207 = vst [vmem:[%s201 + $0x890] sm:$0xff] %v1919
        %2208 = vst [vmem:[%s201 + $0x898] sm:$0xff] %v1920
        %2209 = vst [vmem:[%s201 + $0x8a0] sm:$0xff] %v1921
        %2210 = vst [vmem:[%s201 + $0x8a8] sm:$0xff] %v1922
        %2211 = vst [vmem:[%s201 + $0x8b0] sm:$0xff] %v1923
        %2212 = vst [vmem:[%s201 + $0x8b8] sm:$0xff] %v1924
        %2213 = vst [vmem:[%s201 + $0x8c0] sm:$0xff] %v1925
        %2214 = vst [vmem:[%s201 + $0x8c8] sm:$0xff] %v1926
        %2215 = vst [vmem:[%s201 + $0x8d0] sm:$0xff] %v1927
        %2216 = vst [vmem:[%s201 + $0x8d8] sm:$0xff] %v1928
        %2217 = vst [vmem:[%s201 + $0x8e0] sm:$0xff] %v1929
        %2218 = vst [vmem:[%s201 + $0x8e8] sm:$0xff] %v1930
        %2219 = vst [vmem:[%s201 + $0x8f0] sm:$0xff] %v1931
        %2220 = vst [vmem:[%s201 + $0x8f8] sm:$0xff] %v1932
        %s2221 = sand.u32 %s82, 1
        %s2222 = scalar_lea.sflag [#allocation4], %s2221
        %s2223 = sand.u32 %s82, 1
        %s2224 = smul.addr %s2223, 2304
        %s2225 = scalar_lea.vmem [#allocation7], %s2224
        // Predicated region
        $region37: #{tpu_custom_call.1} parent=27 // pred_check
          %p2226 = pneg %p92
        $region38: #{tpu_custom_call.1} parent=27 // pred_check_branch
          %2228 = sbr.rel (%p2226) target = $region40
        $region39: #{tpu_custom_call.1} parent=27 // pred_region
          %s2229 = smul.u32 288, %s22
          %s2231 = ssub.s32 36864, 36864
          %2232 = vsyncadd %s2222, %s2231
          %s2233 = smul.addr %s2229, 128
          %s2234 = scalar_lea.hbm %s2, %s2233
          %s2235 = sshll.u32 %s2225, 4
          %s2236 = int_to_ptr.vmem [resolvable:$true] %s2235
          %2241 = dma.vmem_to_hbm [thread:$0]  %s2236, 36864, %s2234, %s2222, 128, 128, 8
        $region40: #{tpu_custom_call.1} parent=27 // pred_fallthru
          _
      $region28: #{tpu_custom_call.1} parent=5 // pred_fallthru
        _
      %p2242 = scmp.le.s32.totalorder 2, %s17
      // Predicated region
      $region41: #{tpu_custom_call.1} parent=5 // pred_check
        %p2243 = pneg %p2242
      $region42: #{tpu_custom_call.1} parent=5 // pred_check_branch
        %2245 = sbr.rel (%p2243) target = $region44
      $region43: #{tpu_custom_call.1} parent=5 // pred_region
        %s2246 = ssub.s32 %s17, 2
        // Predicated region
        $region45: #{tpu_custom_call.1} parent=43 // pred_check
          %p2247 = pneg %p98
        $region46: #{tpu_custom_call.1} parent=43 // pred_check_branch
          %2249 = sbr.rel (%p2247) target = $region48
        $region47: #{tpu_custom_call.1} parent=43 // pred_region
          %s2250 = sand.u32 %s83, 1
          %s2251 = scalar_lea.sflag [#allocation4], %s2250
          %s2252 = sand.u32 %s83, 1
          %s2253 = smul.addr %s2252, 2304
          %s2254 = scalar_lea.vmem [#allocation7], %s2253
          %2255 = dma.done %s2251, 36864
        $region48: #{tpu_custom_call.1} parent=43 // pred_fallthru
          _
      $region44: #{tpu_custom_call.1} parent=5 // pred_fallthru
        _
    $region6: #{tpu_custom_call.1} parent=1 // loop_footer
      %s21 = sadd.s32 1, %s17
    $region7: #{tpu_custom_call.1} parent=1 // loop_footer_branch
      %16 = sbr.rel target = $region3
    $region8: #{tpu_custom_call.1} parent=1 // loop_exit
      _
    %2256 = vsyncpa [#allocation3], 1
    %s2257 = scalar_lea.sflag [#allocation3], 1
    %2258 = vsyncpa %s2257, 1
    %2259 = vsyncpa [#allocation6], 1
    %s2260 = scalar_lea.sflag [#allocation6], 1
    %2261 = vsyncpa %s2260, 1
    %2262 = vsyncpa [#allocation4], 1
    %s2263 = scalar_lea.sflag [#allocation4], 1
    %2264 = vsyncpa %s2263, 1

</llo_original>
